<compile_context>
chip_gen: v6e
topology: v6e:2x2x1
jax: 0.10.0
libtpu: 0.0.40
codegen_flags: <defaults>
</compile_context>

<pallas_src>
import functools

import jax
import jax.numpy as jnp
from jax.experimental import pallas as pl
from jax.experimental.pallas import tpu as pltpu


# ---------------------------------------------------------------------------
# Fused two-layer RGCN kernel (single invocation, everything VMEM-resident).
#
#   x_ref      [Np, Cp]        bf16   padded node features
#   adj_ref    [Np, R*Np]      bf16   adj_cat[i, r*Np + j] = A_r[i, j]
#   wrel_ref   [2, R, Cp, Cp]  bf16   per-layer, per-relation weights
#   wroot_ref  [2, Cp, Cp]     bf16   per-layer root weights
#   bias_ref   [2, 1, Cp]      f32    per-layer bias
#   out_ref    [Np, Cp]        f32    layer-2 output (padded)
#   y_ref      [R*Np, Cp]      bf16   scratch: row-stacked X @ W_r
# ---------------------------------------------------------------------------
def _fused_rgcn_kernel(x_ref, adj_ref, wrel_ref, wroot_ref, bias_ref,
                       out_ref, y_ref, *, num_relations, n_pad):
    R, Np = num_relations, n_pad

    def layer(feats_bf16, l):
        # Stage 1: per-relation feature transform, row-stacked into the VMEM
        # scratch so stage 2 can be a single big-K MXU contraction.
        for r in range(R):                       # small static R -> unrolled
            y_ref[pl.ds(r * Np, Np), :] = jnp.dot(
                feats_bf16, wrel_ref[l, r],
                preferred_element_type=jnp.float32,
            ).astype(jnp.bfloat16)

        # Stage 2: ONE batched MXU contraction over K = R*Np:
        #   sum_r A_r @ (X @ W_r)  ==  adj_cat @ Y
        acc = jnp.dot(adj_ref[...], y_ref[...],
                      preferred_element_type=jnp.float32)

        # Root transform + bias; epilogue stays f32 (v5e has no bf16 VPU).
        acc = acc + jnp.dot(feats_bf16, wroot_ref[l],
                            preferred_element_type=jnp.float32)
        return acc + bias_ref[l]                 # (1, Cp) broadcasts over Np

    # Layer 1 + ReLU (kept in vregs) -> Layer 2 -> f32 output.
    h = jnp.maximum(layer(x_ref[...], 0), 0.0).astype(jnp.bfloat16)
    out_ref[...] = layer(h, 1)


def _round_up(v, m):
    return ((v + m - 1) // m) * m


def rgcn_fused_forward(x, adj, params):
    """Run both RGCN layers in one Pallas call.

    x:   [N, C_in]  f32
    adj: [R, N, N]  f32 normalized per-relation adjacency (row i = target)
    """
    N, c_in = x.shape
    R = adj.shape[0]
    hidden = params["conv1"]["w"].shape[-1]
    c_out = params["conv2"]["w"].shape[-1]

    LANE = 128
    Np = _round_up(N, LANE)
    Cp = _round_up(max(c_in, hidden, c_out), LANE)

    # ---- wrapper-side layout & padding (one-time XLA ops) -------------------
    x_p = jnp.pad(x, ((0, Np - N), (0, Cp - c_in))).astype(jnp.bfloat16)

    adj_p = jnp.pad(adj, ((0, 0), (0, Np - N), (0, Np - N)))
    # [R, Np, Np] -> [Np, R*Np]: lets the kernel do sum_r A_r @ Y_r as a
    # single matmul with K = R*Np. Built once, reused by both layers.
    adj_cat = jnp.transpose(adj_p, (1, 0, 2)).reshape(Np, R * Np)
    adj_cat = adj_cat.astype(jnp.bfloat16)

    def pad_rel(w):    # [R, a, b] -> [R, Cp, Cp]
        return jnp.pad(w, ((0, 0), (0, Cp - w.shape[1]), (0, Cp - w.shape[2])))

    def pad_root(w):   # [a, b] -> [Cp, Cp]
        return jnp.pad(w, ((0, Cp - w.shape[0]), (0, Cp - w.shape[1])))

    def pad_bias(b):   # [1, b] -> [1, Cp]
        return jnp.pad(b, ((0, 0), (0, Cp - b.shape[1])))

    w_rel = jnp.stack([pad_rel(params["conv1"]["w"]),
                       pad_rel(params["conv2"]["w"])]).astype(jnp.bfloat16)
    w_root = jnp.stack([pad_root(params["conv1"]["w_root"]),
                        pad_root(params["conv2"]["w_root"])]).astype(jnp.bfloat16)
    bias = jnp.stack([pad_bias(params["conv1"]["bias"]),
                      pad_bias(params["conv2"]["bias"])]).astype(jnp.float32)

    kernel = functools.partial(_fused_rgcn_kernel,
                               num_relations=R, n_pad=Np)

    flops = 2 * 2 * (Np * (R * Np) * Cp       # adj_cat @ Y   (per layer)
                     + R * Np * Cp * Cp       # R x (X @ W_r)
                     + Np * Cp * Cp)          # root matmul
    bytes_accessed = (x_p.size * 2 + adj_cat.size * 2 + w_rel.size * 2
                      + w_root.size * 2 + bias.size * 4 + Np * Cp * 4)

    # Actual VMEM residency (inputs + output + Y scratch), with 2x headroom,
    # kept within the v7x physical budget.
    vmem_resident = (x_p.size * 2 + adj_cat.size * 2 + w_rel.size * 2
                     + w_root.size * 2 + bias.size * 4
                     + Np * Cp * 4              # f32 output
                     + R * Np * Cp * 2)         # bf16 Y scratch
    vmem_limit = int(min(max(2 * vmem_resident, 16 * 1024 * 1024),
                         64 * 1024 * 1024))

    out_p = pl.pallas_call(
        kernel,
        out_shape=jax.ShapeDtypeStruct((Np, Cp), jnp.float32),
        scratch_shapes=[
            pltpu.VMEM((R * Np, Cp), jnp.bfloat16),   # Y = stacked X @ W_r
        ],
        cost_estimate=pl.CostEstimate(flops=flops, transcendentals=0,
                                      bytes_accessed=bytes_accessed),
        compiler_params=pltpu.CompilerParams(vmem_limit_bytes=vmem_limit),
    )(x_p, adj_cat, w_rel, w_root, bias)

    return out_p[:N, :c_out]


# ---------------------------------------------------------------------------
# Glue: edge list -> normalized dense per-relation adjacency (plain JAX).
# ---------------------------------------------------------------------------
def build_normalized_adjacency(edge_index, edge_type, edge_weight,
                               num_nodes, num_relations):
    src = edge_index[0]
    dst = edge_index[1]
    if edge_weight is None:
        edge_weight = jnp.ones(src.shape, jnp.float32)
    adj = jnp.zeros((num_relations, num_nodes, num_nodes), jnp.float32)
    adj = adj.at[edge_type, dst, src].add(edge_weight)
    deg = jnp.zeros((num_relations, num_nodes), jnp.float32)
    deg = deg.at[edge_type, dst].add(1.0)
    adj = adj / jnp.maximum(deg, 1.0)[:, :, None]   # mean aggregation
    return adj


# ---------------------------------------------------------------------------
# Parameter init (deterministic glorot-uniform), mirroring
#   conv1 = RGCNConv(in_channels, 64, num_relations)
#   conv2 = RGCNConv(64, out_channels, num_relations)
# ---------------------------------------------------------------------------
def _glorot(key, shape):
    fan_in, fan_out = shape[-2], shape[-1]
    limit = (6.0 / (fan_in + fan_out)) ** 0.5
    return jax.random.uniform(key, shape, jnp.float32, -limit, limit)


def init_params(key, in_channels, hidden, out_channels, num_relations):
    k = jax.random.split(key, 4)
    return {
        "conv1": {
            "w": _glorot(k[0], (num_relations, in_channels, hidden)),
            "w_root": _glorot(k[1], (in_channels, hidden)),
            "bias": jnp.zeros((1, hidden), jnp.float32),
        },
        "conv2": {
            "w": _glorot(k[2], (num_relations, hidden, out_channels)),
            "w_root": _glorot(k[3], (hidden, out_channels)),
            "bias": jnp.zeros((1, out_channels), jnp.float32),
        },
    }


def base_rgcn_forward(params, x, edge_index, edge_type, edge_weight=None):
    num_nodes = x.shape[0]
    num_relations = params["conv1"]["w"].shape[0]
    adj = build_normalized_adjacency(edge_index, edge_type, edge_weight,
                                     num_nodes, num_relations)
    return rgcn_fused_forward(x, adj, params)


def _reference_forward(params, x, edge_index, edge_type, edge_weight=None):
    """Pure-jnp f32 reference for correctness check."""
    num_nodes = x.shape[0]
    num_relations = params["conv1"]["w"].shape[0]
    adj = build_normalized_adjacency(edge_index, edge_type, edge_weight,
                                     num_nodes, num_relations)

    def layer(x, p):
        out = x @ p["w_root"] + p["bias"]
        out = out + jnp.einsum("rij,jc,rcd->id", adj, x, p["w"])
        return out

    h = jax.nn.relu(layer(x, params["conv1"]))
    return layer(h, params["conv2"])


if __name__ == "__main__":
    N, E = 64, 128                       # nodes, edges
    IN_CH, HIDDEN, OUT_CH, NUM_REL = 16, 64, 32, 3

    key = jax.random.PRNGKey(0)
    keys = jax.random.split(key, 6)
    x = jax.random.normal(keys[0], (N, IN_CH), jnp.float32)
    src = jax.random.randint(keys[1], (E,), 0, N)
    dst = jax.random.randint(keys[2], (E,), 0, N)
    edge_index = jnp.stack([src, dst], axis=0)           # [2, E]
    edge_type = jax.random.randint(keys[3], (E,), 0, NUM_REL)
    edge_weight = jax.random.uniform(keys[4], (E,), jnp.float32, 0.5, 1.5)

    params = init_params(keys[5], IN_CH, HIDDEN, OUT_CH, NUM_REL)

    out = base_rgcn_forward(params, x, edge_index, edge_type, edge_weight)
    out = jax.block_until_ready(out)

    ref = _reference_forward(params, x, edge_index, edge_type, edge_weight)
    assert out.shape == (N, OUT_CH)
    # bf16 MXU operands with f32 accumulation -> compare in max-norm relative
    # to the reference magnitude.
    err = float(jnp.max(jnp.abs(out - ref)))
    tol = 5e-2 * max(float(jnp.max(jnp.abs(ref))), 1.0)
    assert err <= tol, f"mismatch vs reference: max abs err {err} > tol {tol}"

    print("KERNEL_OK")
</pallas_src>

<mosaic_0001>
module attributes {stable_mosaic.version = 11 : i64} {
  func.func @_fused_rgcn_kernel(%arg0: memref<128x128xbf16, #tpu.memory_space<vmem>>, %arg1: memref<128x384xbf16, #tpu.memory_space<vmem>>, %arg2: memref<2x3x128x128xbf16, #tpu.memory_space<vmem>>, %arg3: memref<2x128x128xbf16, #tpu.memory_space<vmem>>, %arg4: memref<2x1x128xf32, #tpu.memory_space<vmem>>, %arg5: memref<128x128xf32, #tpu.memory_space<vmem>>, %arg6: memref<384x128xbf16, #tpu.memory_space<vmem>>) attributes {dimension_semantics = [], scalar_prefetch = 0 : i64, scratch_operands = 1 : i64, tpu.core_type = #tpu.core_type<tc>} {
    %c0 = arith.constant 0 : index
    %c0_0 = arith.constant 0 : index
    %0 = vector.load %arg0[%c0, %c0_0] : memref<128x128xbf16, #tpu.memory_space<vmem>>, vector<128x128xbf16>
    %c0_1 = arith.constant 0 : index
    %c0_2 = arith.constant 0 : index
    %c0_3 = arith.constant 0 : index
    %c0_4 = arith.constant 0 : index
    %1 = vector.load %arg2[%c0_1, %c0_2, %c0_3, %c0_4] : memref<2x3x128x128xbf16, #tpu.memory_space<vmem>>, vector<1x1x128x128xbf16>
    %2 = vector.shape_cast %1 : vector<1x1x128x128xbf16> to vector<128x128xbf16>
    %cst = arith.constant dense<0.000000e+00> : vector<128x128xf32>
    %3 = tpu.matmul %0, %2, %cst {dimension_numbers = #tpu.dot_dimension_numbers<[1], [0], [0], [1], [0, 0, 1, 1], [], []>} : vector<128x128xbf16>, vector<128x128xbf16>, vector<128x128xf32> -> vector<128x128xf32>
    %4 = arith.truncf %3 : vector<128x128xf32> to vector<128x128xbf16>
    %c0_5 = arith.constant 0 : index
    %c0_6 = arith.constant 0 : index
    %5 = vector.load %arg6[%c0_5, %c0_6] : memref<384x128xbf16, #tpu.memory_space<vmem>>, vector<128x128xbf16>
    tpu.vector_store %arg6[%c0_5, %c0_6], %4 {strides = array<i32>} : memref<384x128xbf16, #tpu.memory_space<vmem>>, vector<128x128xbf16>,
    %c0_7 = arith.constant 0 : index
    %c1 = arith.constant 1 : index
    %c0_8 = arith.constant 0 : index
    %c0_9 = arith.constant 0 : index
    %6 = vector.load %arg2[%c0_7, %c1, %c0_8, %c0_9] : memref<2x3x128x128xbf16, #tpu.memory_space<vmem>>, vector<1x1x128x128xbf16>
    %7 = vector.shape_cast %6 : vector<1x1x128x128xbf16> to vector<128x128xbf16>
    %cst_10 = arith.constant dense<0.000000e+00> : vector<128x128xf32>
    %8 = tpu.matmul %0, %7, %cst_10 {dimension_numbers = #tpu.dot_dimension_numbers<[1], [0], [0], [1], [0, 0, 1, 1], [], []>} : vector<128x128xbf16>, vector<128x128xbf16>, vector<128x128xf32> -> vector<128x128xf32>
    %9 = arith.truncf %8 : vector<128x128xf32> to vector<128x128xbf16>
    %c128 = arith.constant 128 : index
    %c0_11 = arith.constant 0 : index
    %10 = vector.load %arg6[%c128, %c0_11] : memref<384x128xbf16, #tpu.memory_space<vmem>>, vector<128x128xbf16>
    tpu.vector_store %arg6[%c128, %c0_11], %9 {strides = array<i32>} : memref<384x128xbf16, #tpu.memory_space<vmem>>, vector<128x128xbf16>,
    %c0_12 = arith.constant 0 : index
    %c2 = arith.constant 2 : index
    %c0_13 = arith.constant 0 : index
    %c0_14 = arith.constant 0 : index
    %11 = vector.load %arg2[%c0_12, %c2, %c0_13, %c0_14] : memref<2x3x128x128xbf16, #tpu.memory_space<vmem>>, vector<1x1x128x128xbf16>
    %12 = vector.shape_cast %11 : vector<1x1x128x128xbf16> to vector<128x128xbf16>
    %cst_15 = arith.constant dense<0.000000e+00> : vector<128x128xf32>
    %13 = tpu.matmul %0, %12, %cst_15 {dimension_numbers = #tpu.dot_dimension_numbers<[1], [0], [0], [1], [0, 0, 1, 1], [], []>} : vector<128x128xbf16>, vector<128x128xbf16>, vector<128x128xf32> -> vector<128x128xf32>
    %14 = arith.truncf %13 : vector<128x128xf32> to vector<128x128xbf16>
    %c256 = arith.constant 256 : index
    %c0_16 = arith.constant 0 : index
    %15 = vector.load %arg6[%c256, %c0_16] : memref<384x128xbf16, #tpu.memory_space<vmem>>, vector<128x128xbf16>
    tpu.vector_store %arg6[%c256, %c0_16], %14 {strides = array<i32>} : memref<384x128xbf16, #tpu.memory_space<vmem>>, vector<128x128xbf16>,
    %c0_17 = arith.constant 0 : index
    %c0_18 = arith.constant 0 : index
    %16 = vector.load %arg1[%c0_17, %c0_18] : memref<128x384xbf16, #tpu.memory_space<vmem>>, vector<128x384xbf16>
    %c0_19 = arith.constant 0 : index
    %c0_20 = arith.constant 0 : index
    %17 = vector.load %arg6[%c0_19, %c0_20] : memref<384x128xbf16, #tpu.memory_space<vmem>>, vector<384x128xbf16>
    %cst_21 = arith.constant dense<0.000000e+00> : vector<128x128xf32>
    %18 = tpu.matmul %16, %17, %cst_21 {dimension_numbers = #tpu.dot_dimension_numbers<[1], [0], [0], [1], [0, 0, 1, 1], [], []>} : vector<128x384xbf16>, vector<384x128xbf16>, vector<128x128xf32> -> vector<128x128xf32>
    %c0_22 = arith.constant 0 : index
    %c0_23 = arith.constant 0 : index
    %c0_24 = arith.constant 0 : index
    %19 = vector.load %arg3[%c0_22, %c0_23, %c0_24] : memref<2x128x128xbf16, #tpu.memory_space<vmem>>, vector<1x128x128xbf16>
    %20 = vector.shape_cast %19 : vector<1x128x128xbf16> to vector<128x128xbf16>
    %cst_25 = arith.constant dense<0.000000e+00> : vector<128x128xf32>
    %21 = tpu.matmul %0, %20, %cst_25 {dimension_numbers = #tpu.dot_dimension_numbers<[1], [0], [0], [1], [0, 0, 1, 1], [], []>} : vector<128x128xbf16>, vector<128x128xbf16>, vector<128x128xf32> -> vector<128x128xf32>
    %22 = arith.addf %18, %21 : vector<128x128xf32>
    %c0_26 = arith.constant 0 : index
    %c0_27 = arith.constant 0 : index
    %c0_28 = arith.constant 0 : index
    %23 = vector.load %arg4[%c0_26, %c0_27, %c0_28] : memref<2x1x128xf32, #tpu.memory_space<vmem>>, vector<1x1x128xf32>
    %24 = vector.shape_cast %23 : vector<1x1x128xf32> to vector<1x128xf32>
    %25 = vector.broadcast %24 : vector<1x128xf32> to vector<128x128xf32>
    %26 = arith.addf %22, %25 : vector<128x128xf32>
    %cst_29 = arith.constant 0.000000e+00 : f32
    %27 = vector.broadcast %cst_29 : f32 to vector<128x128xf32>
    %28 = arith.maximumf %26, %27 : vector<128x128xf32>
    %29 = arith.truncf %28 : vector<128x128xf32> to vector<128x128xbf16>
    %c1_30 = arith.constant 1 : index
    %c0_31 = arith.constant 0 : index
    %c0_32 = arith.constant 0 : index
    %c0_33 = arith.constant 0 : index
    %30 = vector.load %arg2[%c1_30, %c0_31, %c0_32, %c0_33] : memref<2x3x128x128xbf16, #tpu.memory_space<vmem>>, vector<1x1x128x128xbf16>
    %31 = vector.shape_cast %30 : vector<1x1x128x128xbf16> to vector<128x128xbf16>
    %cst_34 = arith.constant dense<0.000000e+00> : vector<128x128xf32>
    %32 = tpu.matmul %29, %31, %cst_34 {dimension_numbers = #tpu.dot_dimension_numbers<[1], [0], [0], [1], [0, 0, 1, 1], [], []>} : vector<128x128xbf16>, vector<128x128xbf16>, vector<128x128xf32> -> vector<128x128xf32>
    %33 = arith.truncf %32 : vector<128x128xf32> to vector<128x128xbf16>
    %c0_35 = arith.constant 0 : index
    %c0_36 = arith.constant 0 : index
    %34 = vector.load %arg6[%c0_35, %c0_36] : memref<384x128xbf16, #tpu.memory_space<vmem>>, vector<128x128xbf16>
    tpu.vector_store %arg6[%c0_35, %c0_36], %33 {strides = array<i32>} : memref<384x128xbf16, #tpu.memory_space<vmem>>, vector<128x128xbf16>,
    %c1_37 = arith.constant 1 : index
    %c1_38 = arith.constant 1 : index
    %c0_39 = arith.constant 0 : index
    %c0_40 = arith.constant 0 : index
    %35 = vector.load %arg2[%c1_37, %c1_38, %c0_39, %c0_40] : memref<2x3x128x128xbf16, #tpu.memory_space<vmem>>, vector<1x1x128x128xbf16>
    %36 = vector.shape_cast %35 : vector<1x1x128x128xbf16> to vector<128x128xbf16>
    %cst_41 = arith.constant dense<0.000000e+00> : vector<128x128xf32>
    %37 = tpu.matmul %29, %36, %cst_41 {dimension_numbers = #tpu.dot_dimension_numbers<[1], [0], [0], [1], [0, 0, 1, 1], [], []>} : vector<128x128xbf16>, vector<128x128xbf16>, vector<128x128xf32> -> vector<128x128xf32>
    %38 = arith.truncf %37 : vector<128x128xf32> to vector<128x128xbf16>
    %c128_42 = arith.constant 128 : index
    %c0_43 = arith.constant 0 : index
    %39 = vector.load %arg6[%c128_42, %c0_43] : memref<384x128xbf16, #tpu.memory_space<vmem>>, vector<128x128xbf16>
    tpu.vector_store %arg6[%c128_42, %c0_43], %38 {strides = array<i32>} : memref<384x128xbf16, #tpu.memory_space<vmem>>, vector<128x128xbf16>,
    %c1_44 = arith.constant 1 : index
    %c2_45 = arith.constant 2 : index
    %c0_46 = arith.constant 0 : index
    %c0_47 = arith.constant 0 : index
    %40 = vector.load %arg2[%c1_44, %c2_45, %c0_46, %c0_47] : memref<2x3x128x128xbf16, #tpu.memory_space<vmem>>, vector<1x1x128x128xbf16>
    %41 = vector.shape_cast %40 : vector<1x1x128x128xbf16> to vector<128x128xbf16>
    %cst_48 = arith.constant dense<0.000000e+00> : vector<128x128xf32>
    %42 = tpu.matmul %29, %41, %cst_48 {dimension_numbers = #tpu.dot_dimension_numbers<[1], [0], [0], [1], [0, 0, 1, 1], [], []>} : vector<128x128xbf16>, vector<128x128xbf16>, vector<128x128xf32> -> vector<128x128xf32>
    %43 = arith.truncf %42 : vector<128x128xf32> to vector<128x128xbf16>
    %c256_49 = arith.constant 256 : index
    %c0_50 = arith.constant 0 : index
    %44 = vector.load %arg6[%c256_49, %c0_50] : memref<384x128xbf16, #tpu.memory_space<vmem>>, vector<128x128xbf16>
    tpu.vector_store %arg6[%c256_49, %c0_50], %43 {strides = array<i32>} : memref<384x128xbf16, #tpu.memory_space<vmem>>, vector<128x128xbf16>,
    %c0_51 = arith.constant 0 : index
    %c0_52 = arith.constant 0 : index
    %45 = vector.load %arg1[%c0_51, %c0_52] : memref<128x384xbf16, #tpu.memory_space<vmem>>, vector<128x384xbf16>
    %c0_53 = arith.constant 0 : index
    %c0_54 = arith.constant 0 : index
    %46 = vector.load %arg6[%c0_53, %c0_54] : memref<384x128xbf16, #tpu.memory_space<vmem>>, vector<384x128xbf16>
    %cst_55 = arith.constant dense<0.000000e+00> : vector<128x128xf32>
    %47 = tpu.matmul %45, %46, %cst_55 {dimension_numbers = #tpu.dot_dimension_numbers<[1], [0], [0], [1], [0, 0, 1, 1], [], []>} : vector<128x384xbf16>, vector<384x128xbf16>, vector<128x128xf32> -> vector<128x128xf32>
    %c1_56 = arith.constant 1 : index
    %c0_57 = arith.constant 0 : index
    %c0_58 = arith.constant 0 : index
    %48 = vector.load %arg3[%c1_56, %c0_57, %c0_58] : memref<2x128x128xbf16, #tpu.memory_space<vmem>>, vector<1x128x128xbf16>
    %49 = vector.shape_cast %48 : vector<1x128x128xbf16> to vector<128x128xbf16>
    %cst_59 = arith.constant dense<0.000000e+00> : vector<128x128xf32>
    %50 = tpu.matmul %29, %49, %cst_59 {dimension_numbers = #tpu.dot_dimension_numbers<[1], [0], [0], [1], [0, 0, 1, 1], [], []>} : vector<128x128xbf16>, vector<128x128xbf16>, vector<128x128xf32> -> vector<128x128xf32>
    %51 = arith.addf %47, %50 : vector<128x128xf32>
    %c1_60 = arith.constant 1 : index
    %c0_61 = arith.constant 0 : index
    %c0_62 = arith.constant 0 : index
    %52 = vector.load %arg4[%c1_60, %c0_61, %c0_62] : memref<2x1x128xf32, #tpu.memory_space<vmem>>, vector<1x1x128xf32>
    %53 = vector.shape_cast %52 : vector<1x1x128xf32> to vector<1x128xf32>
    %54 = vector.broadcast %53 : vector<1x128xf32> to vector<128x128xf32>
    %55 = arith.addf %51, %54 : vector<128x128xf32>
    %c0_63 = arith.constant 0 : index
    %c0_64 = arith.constant 0 : index
    %56 = vector.load %arg5[%c0_63, %c0_64] : memref<128x128xf32, #tpu.memory_space<vmem>>, vector<128x128xf32>
    tpu.vector_store %arg5[%c0_63, %c0_64], %55 {strides = array<i32>} : memref<128x128xf32, #tpu.memory_space<vmem>>, vector<128x128xf32>,
    return
  }
}

</mosaic_0001>

<llo_original>
// kernel: tpu_custom_call.1
$region0: #{tpu_custom_call.1}
  #allocation0 [shape = 'u32[]', space=smem, size = 0x4, offset = 0x4, fixed_abs, tag = 'smem constant byte address 0x4 - core index']
  #allocation1 [shape = 'u32[144,128]{1,0:T(1,128)}', space=vmem, size = 0x12000, scoped, tag = 'internal scratch']
  #allocation2 [shape = 'bf16[384,128]{1,0:T(8,128)(2,1)}', space=vmem, size = 0x18000, scoped, tag = 'scratch operand']
  %s0 = inlined_call_operand.hbm [shape: bf16[128,128], index: 0, kind: input, shape index: {}]
  %s1 = inlined_call_operand.hbm [shape: bf16[128,384], index: 1, kind: input, shape index: {}]
  %s2 = inlined_call_operand.hbm [shape: bf16[2,3,128,128], index: 2, kind: input, shape index: {}]
  %s3 = inlined_call_operand.hbm [shape: bf16[2,128,128], index: 3, kind: input, shape index: {}]
  %s4 = inlined_call_operand.vmem [shape: f32[2,1,128], index: 4, kind: input, shape index: {}]
  %s5 = inlined_call_operand.hbm [shape: f32[128,128], index: 5, kind: output, shape index: {}]
  %s6 = sld [smem:[#allocation0]]
  $region46: #{tpu_custom_call.1} parent=0
    _
  %s8 = ssub.s32 1, %s6
  %s9 = scalar_select 0, %s8, %s6
  $region1: #{tpu_custom_call.1} parent=0
    #allocation3 [shape = 'u8[32768]{0}', space=vmem, size = 0x8000, scoped, tag = 'input window, operand 0, single buffered']
    #allocation4 [shape = 's32[1]{0}', space=sflag, size = 0x4, scoped, tag = 'scoped memory for tpu_custom_call.1']
    #allocation5 [shape = 's32[1]{0}', space=sflag, size = 0x4, scoped, tag = 'scoped memory for tpu_custom_call.1']
    #allocation6 [shape = 'u8[98304]{0}', space=vmem, size = 0x18000, scoped, tag = 'input window, operand 1, single buffered']
    #allocation7 [shape = 's32[1]{0}', space=sflag, size = 0x4, scoped, tag = 'scoped memory for tpu_custom_call.1']
    #allocation8 [shape = 'u8[196608]{0}', space=vmem, size = 0x30000, scoped, tag = 'input window, operand 2, single buffered']
    #allocation9 [shape = 'u8[65536]{0}', space=vmem, size = 0x10000, scoped, tag = 'input window, operand 3, single buffered']
    #allocation10 [shape = 's32[1]{0}', space=sflag, size = 0x4, scoped, tag = 'scoped memory for tpu_custom_call.1']
    #allocation11 [shape = 'u8[65536]{0}', space=vmem, size = 0x10000, scoped, tag = 'output window, operand 0, single buffered']
    %10 = vsyncpa [#allocation4], 0
    %11 = vsyncpa [#allocation7], 0
    %12 = vsyncpa [#allocation10], 0
    %13 = vsyncpa [#allocation5], 0
    // Predicated region
    $region2: #{tpu_custom_call.1} parent=1 // pred_check
      _
    $region3: #{tpu_custom_call.1} parent=1 // pred_check_branch
      %15 = sbr.rel (0) target = $region5
    $region4: #{tpu_custom_call.1} parent=1 // pred_region
      %s17 = ssub.s32 1024, 1024
      %18 = vsyncadd [#allocation4], %s17
      %s19 = sshll.u32 [#allocation3], 4
      %s20 = int_to_ptr.vmem [resolvable:$true] %s19
      %25 = dma.hbm_to_vmem [thread:$0]  %s0, 1024, %s20, [#allocation4], 64, 64, 4
    $region5: #{tpu_custom_call.1} parent=1 // pred_fallthru
      _
    // Predicated region
    $region6: #{tpu_custom_call.1} parent=1 // pred_check
      _
    $region7: #{tpu_custom_call.1} parent=1 // pred_check_branch
      %27 = sbr.rel (0) target = $region9
    $region8: #{tpu_custom_call.1} parent=1 // pred_region
      %s29 = ssub.s32 3072, 3072
      %30 = vsyncadd [#allocation7], %s29
      %s31 = sshll.u32 [#allocation6], 4
      %s32 = int_to_ptr.vmem [resolvable:$true] %s31
      %37 = dma.hbm_to_vmem [thread:$0]  %s1, 3072, %s32, [#allocation7], 192, 192, 12
    $region9: #{tpu_custom_call.1} parent=1 // pred_fallthru
      _
    // Predicated region
    $region10: #{tpu_custom_call.1} parent=1 // pred_check
      _
    $region11: #{tpu_custom_call.1} parent=1 // pred_check_branch
      %39 = sbr.rel (0) target = $region13
    $region12: #{tpu_custom_call.1} parent=1 // pred_region
      %s41 = ssub.s32 6144, 6144
      %42 = vsyncadd [#allocation7], %s41
      %s43 = sshll.u32 [#allocation8], 4
      %s44 = int_to_ptr.vmem [resolvable:$true] %s43
      %49 = dma.hbm_to_vmem [thread:$0]  %s2, 6144, %s44, [#allocation7], 64, 64, 4
    $region13: #{tpu_custom_call.1} parent=1 // pred_fallthru
      _
    // Predicated region
    $region14: #{tpu_custom_call.1} parent=1 // pred_check
      _
    $region15: #{tpu_custom_call.1} parent=1 // pred_check_branch
      %51 = sbr.rel (0) target = $region17
    $region16: #{tpu_custom_call.1} parent=1 // pred_region
      %s53 = ssub.s32 2048, 2048
      %54 = vsyncadd [#allocation10], %s53
      %s55 = sshll.u32 [#allocation9], 4
      %s56 = int_to_ptr.vmem [resolvable:$true] %s55
      %61 = dma.hbm_to_vmem [thread:$0]  %s3, 2048, %s56, [#allocation10], 64, 64, 4
    $region17: #{tpu_custom_call.1} parent=1 // pred_fallthru
      _
    // Predicated region
    $region18: #{tpu_custom_call.1} parent=1 // pred_check
      _
    $region19: #{tpu_custom_call.1} parent=1 // pred_check_branch
      %63 = sbr.rel (0) target = $region21
    $region20: #{tpu_custom_call.1} parent=1 // pred_region
      _
    $region21: #{tpu_custom_call.1} parent=1 // pred_fallthru
      _
    // Predicated region
    $region22: #{tpu_custom_call.1} parent=1 // pred_check
      _
    $region23: #{tpu_custom_call.1} parent=1 // pred_check_branch
      %65 = sbr.rel (0) target = $region25
    $region24: #{tpu_custom_call.1} parent=1 // pred_region
      %66 = dma.done [#allocation4], 1024
    $region25: #{tpu_custom_call.1} parent=1 // pred_fallthru
      _
    // Predicated region
    $region26: #{tpu_custom_call.1} parent=1 // pred_check
      _
    $region27: #{tpu_custom_call.1} parent=1 // pred_check_branch
      %68 = sbr.rel (0) target = $region29
    $region28: #{tpu_custom_call.1} parent=1 // pred_region
      %69 = dma.done [#allocation7], 3072
    $region29: #{tpu_custom_call.1} parent=1 // pred_fallthru
      _
    // Predicated region
    $region30: #{tpu_custom_call.1} parent=1 // pred_check
      _
    $region31: #{tpu_custom_call.1} parent=1 // pred_check_branch
      %71 = sbr.rel (0) target = $region33
    $region32: #{tpu_custom_call.1} parent=1 // pred_region
      %72 = dma.done [#allocation7], 6144
    $region33: #{tpu_custom_call.1} parent=1 // pred_fallthru
      _
    // Predicated region
    $region34: #{tpu_custom_call.1} parent=1 // pred_check
      _
    $region35: #{tpu_custom_call.1} parent=1 // pred_check_branch
      %74 = sbr.rel (0) target = $region37
    $region36: #{tpu_custom_call.1} parent=1 // pred_region
      %75 = dma.done [#allocation10], 2048
    $region37: #{tpu_custom_call.1} parent=1 // pred_fallthru
      _
    %v77 = vld [vmem:[#allocation3] sm:$0xf]
    %v78 = vld [vmem:[#allocation3 + $0x4] sm:$0xf]
    %v79 = vld [vmem:[#allocation3 + $0x8] sm:$0xf]
    %v80 = vld [vmem:[#allocation3 + $0xc] sm:$0xf]
    %v81 = vld [vmem:[#allocation3 + $0x10] sm:$0xf]
    %v82 = vld [vmem:[#allocation3 + $0x14] sm:$0xf]
    %v83 = vld [vmem:[#allocation3 + $0x18] sm:$0xf]
    %v84 = vld [vmem:[#allocation3 + $0x1c] sm:$0xf]
    %v85 = vld [vmem:[#allocation3 + $0x20] sm:$0xf]
    %v86 = vld [vmem:[#allocation3 + $0x24] sm:$0xf]
    %v87 = vld [vmem:[#allocation3 + $0x28] sm:$0xf]
    %v88 = vld [vmem:[#allocation3 + $0x2c] sm:$0xf]
    %v89 = vld [vmem:[#allocation3 + $0x30] sm:$0xf]
    %v90 = vld [vmem:[#allocation3 + $0x34] sm:$0xf]
    %v91 = vld [vmem:[#allocation3 + $0x38] sm:$0xf]
    %v92 = vld [vmem:[#allocation3 + $0x3c] sm:$0xf]
    %v93 = vld [vmem:[#allocation8] sm:$0xf]
    %v94 = vld [vmem:[#allocation8 + $0x4] sm:$0xf]
    %v95 = vld [vmem:[#allocation8 + $0x8] sm:$0xf]
    %v96 = vld [vmem:[#allocation8 + $0xc] sm:$0xf]
    %v97 = vld [vmem:[#allocation8 + $0x10] sm:$0xf]
    %v98 = vld [vmem:[#allocation8 + $0x14] sm:$0xf]
    %v99 = vld [vmem:[#allocation8 + $0x18] sm:$0xf]
    %v100 = vld [vmem:[#allocation8 + $0x1c] sm:$0xf]
    %v101 = vld [vmem:[#allocation8 + $0x20] sm:$0xf]
    %v102 = vld [vmem:[#allocation8 + $0x24] sm:$0xf]
    %v103 = vld [vmem:[#allocation8 + $0x28] sm:$0xf]
    %v104 = vld [vmem:[#allocation8 + $0x2c] sm:$0xf]
    %v105 = vld [vmem:[#allocation8 + $0x30] sm:$0xf]
    %v106 = vld [vmem:[#allocation8 + $0x34] sm:$0xf]
    %v107 = vld [vmem:[#allocation8 + $0x38] sm:$0xf]
    %v108 = vld [vmem:[#allocation8 + $0x3c] sm:$0xf]
    %v125 = vunpack.c.l.b16 %v77
    %v126 = vunpack.c.l.b16 %v78
    %v127 = vunpack.c.l.b16 %v79
    %v128 = vunpack.c.l.b16 %v80
    %v129 = vunpack.c.l.b16 %v81
    %v130 = vunpack.c.l.b16 %v82
    %v131 = vunpack.c.l.b16 %v83
    %v132 = vunpack.c.l.b16 %v84
    %v133 = vunpack.c.l.b16 %v85
    %v134 = vunpack.c.l.b16 %v86
    %v135 = vunpack.c.l.b16 %v87
    %v136 = vunpack.c.l.b16 %v88
    %v137 = vunpack.c.l.b16 %v89
    %v138 = vunpack.c.l.b16 %v90
    %v139 = vunpack.c.l.b16 %v91
    %v140 = vunpack.c.l.b16 %v92
    %v141 = vpack.c.b16 %v126, %v125
    %v142 = vpack.c.b16 %v128, %v127
    %v143 = vpack.c.b16 %v130, %v129
    %v144 = vpack.c.b16 %v132, %v131
    %v145 = vpack.c.b16 %v134, %v133
    %v146 = vpack.c.b16 %v136, %v135
    %v147 = vpack.c.b16 %v138, %v137
    %v148 = vpack.c.b16 %v140, %v139
    %v173 = vunpack.c.l.b16 %v93
    %v174 = vunpack.c.l.b16 %v94
    %v175 = vunpack.c.l.b16 %v95
    %v176 = vunpack.c.l.b16 %v96
    %v177 = vunpack.c.l.b16 %v97
    %v178 = vunpack.c.l.b16 %v98
    %v179 = vunpack.c.l.b16 %v99
    %v180 = vunpack.c.l.b16 %v100
    %v181 = vunpack.c.l.b16 %v101
    %v182 = vunpack.c.l.b16 %v102
    %v183 = vunpack.c.l.b16 %v103
    %v184 = vunpack.c.l.b16 %v104
    %v185 = vunpack.c.l.b16 %v105
    %v186 = vunpack.c.l.b16 %v106
    %v187 = vunpack.c.l.b16 %v107
    %v188 = vunpack.c.l.b16 %v108
    %v189 = vpack.c.b16 %v174, %v173
    %v190 = vpack.c.b16 %v176, %v175
    %v191 = vpack.c.b16 %v178, %v177
    %v192 = vpack.c.b16 %v180, %v179
    %v193 = vpack.c.b16 %v182, %v181
    %v194 = vpack.c.b16 %v184, %v183
    %v195 = vpack.c.b16 %v186, %v185
    %v196 = vpack.c.b16 %v188, %v187
    %205 = vmatprep.subr.bf16.mxu0 0
    %206 = vmatpush1.bf16.msra.mxu0 %v196
    %207 = vmatprep.subr.bf16.mxu0 0
    %208 = vmatpush1.bf16.msra.mxu0 %v195
    %209 = vmatprep.subr.bf16.mxu0 0
    %210 = vmatpush1.bf16.msra.mxu0 %v194
    %211 = vmatprep.subr.bf16.mxu0 0
    %212 = vmatpush1.bf16.msra.mxu0 %v193
    %213 = vmatprep.subr.bf16.mxu0 0
    %214 = vmatpush1.bf16.msra.mxu0 %v192
    %215 = vmatprep.subr.bf16.mxu0 0
    %216 = vmatpush1.bf16.msra.mxu0 %v191
    %217 = vmatprep.subr.bf16.mxu0 0
    %218 = vmatpush1.bf16.msra.mxu0 %v190
    %219 = vmatprep.subr.bf16.mxu0 0
    %220 = vmatpush1.bf16.msra.mxu0 %v189
    %221 = vmatprep.subr.bf16.mxu0 0
    %222 = vmatpush2.bf16.msra.mxu0 0
    %223 = vmatprep.subr.bf16.mxu0 0
    %224 = vmatpush2.bf16.msra.mxu0 0
    %225 = vmatprep.subr.bf16.mxu0 0
    %226 = vmatpush2.bf16.msra.mxu0 0
    %227 = vmatprep.subr.bf16.mxu0 0
    %228 = vmatpush2.bf16.msra.mxu0 0
    %229 = vmatprep.subr.bf16.mxu0 0
    %230 = vmatpush2.bf16.msra.mxu0 0
    %231 = vmatprep.subr.bf16.mxu0 0
    %232 = vmatpush2.bf16.msra.mxu0 0
    %233 = vmatprep.subr.bf16.mxu0 0
    %234 = vmatpush2.bf16.msra.mxu0 0
    %235 = vmatprep.subr.bf16.mxu0 0
    %236 = vmatpush2.bf16.msra.mxu0 0
    %237 = vmatprep.mubr.bf16.mxu0 0
    %238 = vmatmul.mubr.bf16.gmra.mxu0 %v141
    %v239 = vpop.f32.mrf.mxu0
    %v240 = vadd.f32 0.0, %v239
    %v241 = vpop.f32.mrf.mxu0
    %v242 = vpop.f32.mrf.mxu0
    %v243 = vadd.f32 0.0, %v242
    %v244 = vpop.f32.mrf.mxu0
    %245 = vmatprep.mubr.bf16.mxu0 0
    %246 = vmatmul.mubr.bf16.gmra.mxu0 %v142
    %v247 = vpop.f32.mrf.mxu0
    %v248 = vadd.f32 0.0, %v247
    %v249 = vpop.f32.mrf.mxu0
    %v250 = vpop.f32.mrf.mxu0
    %v251 = vadd.f32 0.0, %v250
    %v252 = vpop.f32.mrf.mxu0
    %253 = vmatprep.mubr.bf16.mxu0 0
    %254 = vmatmul.mubr.bf16.gmra.mxu0 %v143
    %v255 = vpop.f32.mrf.mxu0
    %v256 = vadd.f32 0.0, %v255
    %v257 = vpop.f32.mrf.mxu0
    %v258 = vpop.f32.mrf.mxu0
    %v259 = vadd.f32 0.0, %v258
    %v260 = vpop.f32.mrf.mxu0
    %261 = vmatprep.mubr.bf16.mxu0 0
    %262 = vmatmul.mubr.bf16.gmra.mxu0 %v144
    %v263 = vpop.f32.mrf.mxu0
    %v264 = vadd.f32 0.0, %v263
    %v265 = vpop.f32.mrf.mxu0
    %v266 = vpop.f32.mrf.mxu0
    %v267 = vadd.f32 0.0, %v266
    %v268 = vpop.f32.mrf.mxu0
    %269 = vmatprep.mubr.bf16.mxu0 0
    %270 = vmatmul.mubr.bf16.gmra.mxu0 %v145
    %v271 = vpop.f32.mrf.mxu0
    %v272 = vadd.f32 0.0, %v271
    %v273 = vpop.f32.mrf.mxu0
    %v274 = vpop.f32.mrf.mxu0
    %v275 = vadd.f32 0.0, %v274
    %v276 = vpop.f32.mrf.mxu0
    %277 = vmatprep.mubr.bf16.mxu0 0
    %278 = vmatmul.mubr.bf16.gmra.mxu0 %v146
    %v279 = vpop.f32.mrf.mxu0
    %v280 = vadd.f32 0.0, %v279
    %v281 = vpop.f32.mrf.mxu0
    %v282 = vpop.f32.mrf.mxu0
    %v283 = vadd.f32 0.0, %v282
    %v284 = vpop.f32.mrf.mxu0
    %285 = vmatprep.mubr.bf16.mxu0 0
    %286 = vmatmul.mubr.bf16.gmra.mxu0 %v147
    %v287 = vpop.f32.mrf.mxu0
    %v288 = vadd.f32 0.0, %v287
    %v289 = vpop.f32.mrf.mxu0
    %v290 = vpop.f32.mrf.mxu0
    %v291 = vadd.f32 0.0, %v290
    %v292 = vpop.f32.mrf.mxu0
    %293 = vmatprep.mubr.bf16.mxu0 0
    %294 = vmatmul.mubr.bf16.gmra.mxu0 %v148
    %v295 = vpop.f32.mrf.mxu0
    %v296 = vadd.f32 0.0, %v295
    %v297 = vpop.f32.mrf.mxu0
    %v298 = vpop.f32.mrf.mxu0
    %v299 = vadd.f32 0.0, %v298
    %v300 = vpop.f32.mrf.mxu0
    %301 = vdwg.mxu0
    %v302 = vpack.c.bf16 %v243, %v240
    %v303 = vpack.c.bf16 %v251, %v248
    %v304 = vpack.c.bf16 %v259, %v256
    %v305 = vpack.c.bf16 %v267, %v264
    %v306 = vpack.c.bf16 %v275, %v272
    %v307 = vpack.c.bf16 %v283, %v280
    %v308 = vpack.c.bf16 %v291, %v288
    %v309 = vpack.c.bf16 %v299, %v296
    %v318 = vunpack.c.l.b16 %v302
    %v319 = vunpack.c.h.b16 %v302
    %v320 = vunpack.c.l.b16 %v303
    %v321 = vunpack.c.h.b16 %v303
    %v322 = vunpack.c.l.b16 %v304
    %v323 = vunpack.c.h.b16 %v304
    %v324 = vunpack.c.l.b16 %v305
    %v325 = vunpack.c.h.b16 %v305
    %v326 = vunpack.c.l.b16 %v306
    %v327 = vunpack.c.h.b16 %v306
    %v328 = vunpack.c.l.b16 %v307
    %v329 = vunpack.c.h.b16 %v307
    %v330 = vunpack.c.l.b16 %v308
    %v331 = vunpack.c.h.b16 %v308
    %v332 = vunpack.c.l.b16 %v309
    %v333 = vunpack.c.h.b16 %v309
    %v334 = vpack.c.b16 %v318, %v318
    %v335 = vpack.c.b16 %v319, %v319
    %v336 = vpack.c.b16 %v320, %v320
    %v337 = vpack.c.b16 %v321, %v321
    %v338 = vpack.c.b16 %v322, %v322
    %v339 = vpack.c.b16 %v323, %v323
    %v340 = vpack.c.b16 %v324, %v324
    %v341 = vpack.c.b16 %v325, %v325
    %v342 = vpack.c.b16 %v326, %v326
    %v343 = vpack.c.b16 %v327, %v327
    %v344 = vpack.c.b16 %v328, %v328
    %v345 = vpack.c.b16 %v329, %v329
    %v346 = vpack.c.b16 %v330, %v330
    %v347 = vpack.c.b16 %v331, %v331
    %v348 = vpack.c.b16 %v332, %v332
    %v349 = vpack.c.b16 %v333, %v333
    %366 = vst [vmem:[#allocation2] sm:$0xf] %v334
    %367 = vst [vmem:[#allocation2 + $0x4] sm:$0xf] %v335
    %368 = vst [vmem:[#allocation2 + $0x8] sm:$0xf] %v336
    %369 = vst [vmem:[#allocation2 + $0xc] sm:$0xf] %v337
    %370 = vst [vmem:[#allocation2 + $0x10] sm:$0xf] %v338
    %371 = vst [vmem:[#allocation2 + $0x14] sm:$0xf] %v339
    %372 = vst [vmem:[#allocation2 + $0x18] sm:$0xf] %v340
    %373 = vst [vmem:[#allocation2 + $0x1c] sm:$0xf] %v341
    %374 = vst [vmem:[#allocation2 + $0x20] sm:$0xf] %v342
    %375 = vst [vmem:[#allocation2 + $0x24] sm:$0xf] %v343
    %376 = vst [vmem:[#allocation2 + $0x28] sm:$0xf] %v344
    %377 = vst [vmem:[#allocation2 + $0x2c] sm:$0xf] %v345
    %378 = vst [vmem:[#allocation2 + $0x30] sm:$0xf] %v346
    %379 = vst [vmem:[#allocation2 + $0x34] sm:$0xf] %v347
    %380 = vst [vmem:[#allocation2 + $0x38] sm:$0xf] %v348
    %381 = vst [vmem:[#allocation2 + $0x3c] sm:$0xf] %v349
    %s382 = scalar_lea.vmem [#allocation8], 64
    %v383 = vld [vmem:[%s382] sm:$0xf]
    %v384 = vld [vmem:[%s382 + $0x4] sm:$0xf]
    %v385 = vld [vmem:[%s382 + $0x8] sm:$0xf]
    %v386 = vld [vmem:[%s382 + $0xc] sm:$0xf]
    %v387 = vld [vmem:[%s382 + $0x10] sm:$0xf]
    %v388 = vld [vmem:[%s382 + $0x14] sm:$0xf]
    %v389 = vld [vmem:[%s382 + $0x18] sm:$0xf]
    %v390 = vld [vmem:[%s382 + $0x1c] sm:$0xf]
    %v391 = vld [vmem:[%s382 + $0x20] sm:$0xf]
    %v392 = vld [vmem:[%s382 + $0x24] sm:$0xf]
    %v393 = vld [vmem:[%s382 + $0x28] sm:$0xf]
    %v394 = vld [vmem:[%s382 + $0x2c] sm:$0xf]
    %v395 = vld [vmem:[%s382 + $0x30] sm:$0xf]
    %v396 = vld [vmem:[%s382 + $0x34] sm:$0xf]
    %v397 = vld [vmem:[%s382 + $0x38] sm:$0xf]
    %v398 = vld [vmem:[%s382 + $0x3c] sm:$0xf]
    %v415 = vunpack.c.l.b16 %v383
    %v416 = vunpack.c.l.b16 %v384
    %v417 = vunpack.c.l.b16 %v385
    %v418 = vunpack.c.l.b16 %v386
    %v419 = vunpack.c.l.b16 %v387
    %v420 = vunpack.c.l.b16 %v388
    %v421 = vunpack.c.l.b16 %v389
    %v422 = vunpack.c.l.b16 %v390
    %v423 = vunpack.c.l.b16 %v391
    %v424 = vunpack.c.l.b16 %v392
    %v425 = vunpack.c.l.b16 %v393
    %v426 = vunpack.c.l.b16 %v394
    %v427 = vunpack.c.l.b16 %v395
    %v428 = vunpack.c.l.b16 %v396
    %v429 = vunpack.c.l.b16 %v397
    %v430 = vunpack.c.l.b16 %v398
    %v431 = vpack.c.b16 %v416, %v415
    %v432 = vpack.c.b16 %v418, %v417
    %v433 = vpack.c.b16 %v420, %v419
    %v434 = vpack.c.b16 %v422, %v421
    %v435 = vpack.c.b16 %v424, %v423
    %v436 = vpack.c.b16 %v426, %v425
    %v437 = vpack.c.b16 %v428, %v427
    %v438 = vpack.c.b16 %v430, %v429
    %447 = vmatprep.subr.bf16.mxu0 0
    %448 = vmatpush1.bf16.msra.mxu0 %v438
    %449 = vmatprep.subr.bf16.mxu0 0
    %450 = vmatpush1.bf16.msra.mxu0 %v437
    %451 = vmatprep.subr.bf16.mxu0 0
    %452 = vmatpush1.bf16.msra.mxu0 %v436
    %453 = vmatprep.subr.bf16.mxu0 0
    %454 = vmatpush1.bf16.msra.mxu0 %v435
    %455 = vmatprep.subr.bf16.mxu0 0
    %456 = vmatpush1.bf16.msra.mxu0 %v434
    %457 = vmatprep.subr.bf16.mxu0 0
    %458 = vmatpush1.bf16.msra.mxu0 %v433
    %459 = vmatprep.subr.bf16.mxu0 0
    %460 = vmatpush1.bf16.msra.mxu0 %v432
    %461 = vmatprep.subr.bf16.mxu0 0
    %462 = vmatpush1.bf16.msra.mxu0 %v431
    %463 = vmatprep.subr.bf16.mxu0 0
    %464 = vmatpush2.bf16.msra.mxu0 0
    %465 = vmatprep.subr.bf16.mxu0 0
    %466 = vmatpush2.bf16.msra.mxu0 0
    %467 = vmatprep.subr.bf16.mxu0 0
    %468 = vmatpush2.bf16.msra.mxu0 0
    %469 = vmatprep.subr.bf16.mxu0 0
    %470 = vmatpush2.bf16.msra.mxu0 0
    %471 = vmatprep.subr.bf16.mxu0 0
    %472 = vmatpush2.bf16.msra.mxu0 0
    %473 = vmatprep.subr.bf16.mxu0 0
    %474 = vmatpush2.bf16.msra.mxu0 0
    %475 = vmatprep.subr.bf16.mxu0 0
    %476 = vmatpush2.bf16.msra.mxu0 0
    %477 = vmatprep.subr.bf16.mxu0 0
    %478 = vmatpush2.bf16.msra.mxu0 0
    %479 = vmatprep.mubr.bf16.mxu0 0
    %480 = vmatmul.mubr.bf16.gmra.mxu0 %v141
    %v481 = vpop.f32.mrf.mxu0
    %v482 = vadd.f32 0.0, %v481
    %v483 = vpop.f32.mrf.mxu0
    %v484 = vpop.f32.mrf.mxu0
    %v485 = vadd.f32 0.0, %v484
    %v486 = vpop.f32.mrf.mxu0
    %487 = vmatprep.mubr.bf16.mxu0 0
    %488 = vmatmul.mubr.bf16.gmra.mxu0 %v142
    %v489 = vpop.f32.mrf.mxu0
    %v490 = vadd.f32 0.0, %v489
    %v491 = vpop.f32.mrf.mxu0
    %v492 = vpop.f32.mrf.mxu0
    %v493 = vadd.f32 0.0, %v492
    %v494 = vpop.f32.mrf.mxu0
    %495 = vmatprep.mubr.bf16.mxu0 0
    %496 = vmatmul.mubr.bf16.gmra.mxu0 %v143
    %v497 = vpop.f32.mrf.mxu0
    %v498 = vadd.f32 0.0, %v497
    %v499 = vpop.f32.mrf.mxu0
    %v500 = vpop.f32.mrf.mxu0
    %v501 = vadd.f32 0.0, %v500
    %v502 = vpop.f32.mrf.mxu0
    %503 = vmatprep.mubr.bf16.mxu0 0
    %504 = vmatmul.mubr.bf16.gmra.mxu0 %v144
    %v505 = vpop.f32.mrf.mxu0
    %v506 = vadd.f32 0.0, %v505
    %v507 = vpop.f32.mrf.mxu0
    %v508 = vpop.f32.mrf.mxu0
    %v509 = vadd.f32 0.0, %v508
    %v510 = vpop.f32.mrf.mxu0
    %511 = vmatprep.mubr.bf16.mxu0 0
    %512 = vmatmul.mubr.bf16.gmra.mxu0 %v145
    %v513 = vpop.f32.mrf.mxu0
    %v514 = vadd.f32 0.0, %v513
    %v515 = vpop.f32.mrf.mxu0
    %v516 = vpop.f32.mrf.mxu0
    %v517 = vadd.f32 0.0, %v516
    %v518 = vpop.f32.mrf.mxu0
    %519 = vmatprep.mubr.bf16.mxu0 0
    %520 = vmatmul.mubr.bf16.gmra.mxu0 %v146
    %v521 = vpop.f32.mrf.mxu0
    %v522 = vadd.f32 0.0, %v521
    %v523 = vpop.f32.mrf.mxu0
    %v524 = vpop.f32.mrf.mxu0
    %v525 = vadd.f32 0.0, %v524
    %v526 = vpop.f32.mrf.mxu0
    %527 = vmatprep.mubr.bf16.mxu0 0
    %528 = vmatmul.mubr.bf16.gmra.mxu0 %v147
    %v529 = vpop.f32.mrf.mxu0
    %v530 = vadd.f32 0.0, %v529
    %v531 = vpop.f32.mrf.mxu0
    %v532 = vpop.f32.mrf.mxu0
    %v533 = vadd.f32 0.0, %v532
    %v534 = vpop.f32.mrf.mxu0
    %535 = vmatprep.mubr.bf16.mxu0 0
    %536 = vmatmul.mubr.bf16.gmra.mxu0 %v148
    %v537 = vpop.f32.mrf.mxu0
    %v538 = vadd.f32 0.0, %v537
    %v539 = vpop.f32.mrf.mxu0
    %v540 = vpop.f32.mrf.mxu0
    %v541 = vadd.f32 0.0, %v540
    %v542 = vpop.f32.mrf.mxu0
    %543 = vdwg.mxu0
    %v544 = vpack.c.bf16 %v485, %v482
    %v545 = vpack.c.bf16 %v493, %v490
    %v546 = vpack.c.bf16 %v501, %v498
    %v547 = vpack.c.bf16 %v509, %v506
    %v548 = vpack.c.bf16 %v517, %v514
    %v549 = vpack.c.bf16 %v525, %v522
    %v550 = vpack.c.bf16 %v533, %v530
    %v551 = vpack.c.bf16 %v541, %v538
    %v560 = vunpack.c.l.b16 %v544
    %v561 = vunpack.c.h.b16 %v544
    %v562 = vunpack.c.l.b16 %v545
    %v563 = vunpack.c.h.b16 %v545
    %v564 = vunpack.c.l.b16 %v546
    %v565 = vunpack.c.h.b16 %v546
    %v566 = vunpack.c.l.b16 %v547
    %v567 = vunpack.c.h.b16 %v547
    %v568 = vunpack.c.l.b16 %v548
    %v569 = vunpack.c.h.b16 %v548
    %v570 = vunpack.c.l.b16 %v549
    %v571 = vunpack.c.h.b16 %v549
    %v572 = vunpack.c.l.b16 %v550
    %v573 = vunpack.c.h.b16 %v550
    %v574 = vunpack.c.l.b16 %v551
    %v575 = vunpack.c.h.b16 %v551
    %v576 = vpack.c.b16 %v560, %v560
    %v577 = vpack.c.b16 %v561, %v561
    %v578 = vpack.c.b16 %v562, %v562
    %v579 = vpack.c.b16 %v563, %v563
    %v580 = vpack.c.b16 %v564, %v564
    %v581 = vpack.c.b16 %v565, %v565
    %v582 = vpack.c.b16 %v566, %v566
    %v583 = vpack.c.b16 %v567, %v567
    %v584 = vpack.c.b16 %v568, %v568
    %v585 = vpack.c.b16 %v569, %v569
    %v586 = vpack.c.b16 %v570, %v570
    %v587 = vpack.c.b16 %v571, %v571
    %v588 = vpack.c.b16 %v572, %v572
    %v589 = vpack.c.b16 %v573, %v573
    %v590 = vpack.c.b16 %v574, %v574
    %v591 = vpack.c.b16 %v575, %v575
    %608 = vst [vmem:[#allocation2 + $0x40] sm:$0xf] %v576
    %609 = vst [vmem:[#allocation2 + $0x44] sm:$0xf] %v577
    %610 = vst [vmem:[#allocation2 + $0x48] sm:$0xf] %v578
    %611 = vst [vmem:[#allocation2 + $0x4c] sm:$0xf] %v579
    %612 = vst [vmem:[#allocation2 + $0x50] sm:$0xf] %v580
    %613 = vst [vmem:[#allocation2 + $0x54] sm:$0xf] %v581
    %614 = vst [vmem:[#allocation2 + $0x58] sm:$0xf] %v582
    %615 = vst [vmem:[#allocation2 + $0x5c] sm:$0xf] %v583
    %616 = vst [vmem:[#allocation2 + $0x60] sm:$0xf] %v584
    %617 = vst [vmem:[#allocation2 + $0x64] sm:$0xf] %v585
    %618 = vst [vmem:[#allocation2 + $0x68] sm:$0xf] %v586
    %619 = vst [vmem:[#allocation2 + $0x6c] sm:$0xf] %v587
    %620 = vst [vmem:[#allocation2 + $0x70] sm:$0xf] %v588
    %621 = vst [vmem:[#allocation2 + $0x74] sm:$0xf] %v589
    %622 = vst [vmem:[#allocation2 + $0x78] sm:$0xf] %v590
    %623 = vst [vmem:[#allocation2 + $0x7c] sm:$0xf] %v591
    %s624 = scalar_lea.vmem [#allocation8], 128
    %v625 = vld [vmem:[%s624] sm:$0xf]
    %v626 = vld [vmem:[%s624 + $0x4] sm:$0xf]
    %v627 = vld [vmem:[%s624 + $0x8] sm:$0xf]
    %v628 = vld [vmem:[%s624 + $0xc] sm:$0xf]
    %v629 = vld [vmem:[%s624 + $0x10] sm:$0xf]
    %v630 = vld [vmem:[%s624 + $0x14] sm:$0xf]
    %v631 = vld [vmem:[%s624 + $0x18] sm:$0xf]
    %v632 = vld [vmem:[%s624 + $0x1c] sm:$0xf]
    %v633 = vld [vmem:[%s624 + $0x20] sm:$0xf]
    %v634 = vld [vmem:[%s624 + $0x24] sm:$0xf]
    %v635 = vld [vmem:[%s624 + $0x28] sm:$0xf]
    %v636 = vld [vmem:[%s624 + $0x2c] sm:$0xf]
    %v637 = vld [vmem:[%s624 + $0x30] sm:$0xf]
    %v638 = vld [vmem:[%s624 + $0x34] sm:$0xf]
    %v639 = vld [vmem:[%s624 + $0x38] sm:$0xf]
    %v640 = vld [vmem:[%s624 + $0x3c] sm:$0xf]
    %v657 = vunpack.c.l.b16 %v625
    %v658 = vunpack.c.l.b16 %v626
    %v659 = vunpack.c.l.b16 %v627
    %v660 = vunpack.c.l.b16 %v628
    %v661 = vunpack.c.l.b16 %v629
    %v662 = vunpack.c.l.b16 %v630
    %v663 = vunpack.c.l.b16 %v631
    %v664 = vunpack.c.l.b16 %v632
    %v665 = vunpack.c.l.b16 %v633
    %v666 = vunpack.c.l.b16 %v634
    %v667 = vunpack.c.l.b16 %v635
    %v668 = vunpack.c.l.b16 %v636
    %v669 = vunpack.c.l.b16 %v637
    %v670 = vunpack.c.l.b16 %v638
    %v671 = vunpack.c.l.b16 %v639
    %v672 = vunpack.c.l.b16 %v640
    %v673 = vpack.c.b16 %v658, %v657
    %v674 = vpack.c.b16 %v660, %v659
    %v675 = vpack.c.b16 %v662, %v661
    %v676 = vpack.c.b16 %v664, %v663
    %v677 = vpack.c.b16 %v666, %v665
    %v678 = vpack.c.b16 %v668, %v667
    %v679 = vpack.c.b16 %v670, %v669
    %v680 = vpack.c.b16 %v672, %v671
    %689 = vmatprep.subr.bf16.mxu0 0
    %690 = vmatpush1.bf16.msra.mxu0 %v680
    %691 = vmatprep.subr.bf16.mxu0 0
    %692 = vmatpush1.bf16.msra.mxu0 %v679
    %693 = vmatprep.subr.bf16.mxu0 0
    %694 = vmatpush1.bf16.msra.mxu0 %v678
    %695 = vmatprep.subr.bf16.mxu0 0
    %696 = vmatpush1.bf16.msra.mxu0 %v677
    %697 = vmatprep.subr.bf16.mxu0 0
    %698 = vmatpush1.bf16.msra.mxu0 %v676
    %699 = vmatprep.subr.bf16.mxu0 0
    %700 = vmatpush1.bf16.msra.mxu0 %v675
    %701 = vmatprep.subr.bf16.mxu0 0
    %702 = vmatpush1.bf16.msra.mxu0 %v674
    %703 = vmatprep.subr.bf16.mxu0 0
    %704 = vmatpush1.bf16.msra.mxu0 %v673
    %705 = vmatprep.subr.bf16.mxu0 0
    %706 = vmatpush2.bf16.msra.mxu0 0
    %707 = vmatprep.subr.bf16.mxu0 0
    %708 = vmatpush2.bf16.msra.mxu0 0
    %709 = vmatprep.subr.bf16.mxu0 0
    %710 = vmatpush2.bf16.msra.mxu0 0
    %711 = vmatprep.subr.bf16.mxu0 0
    %712 = vmatpush2.bf16.msra.mxu0 0
    %713 = vmatprep.subr.bf16.mxu0 0
    %714 = vmatpush2.bf16.msra.mxu0 0
    %715 = vmatprep.subr.bf16.mxu0 0
    %716 = vmatpush2.bf16.msra.mxu0 0
    %717 = vmatprep.subr.bf16.mxu0 0
    %718 = vmatpush2.bf16.msra.mxu0 0
    %719 = vmatprep.subr.bf16.mxu0 0
    %720 = vmatpush2.bf16.msra.mxu0 0
    %721 = vmatprep.mubr.bf16.mxu0 0
    %722 = vmatmul.mubr.bf16.gmra.mxu0 %v141
    %v723 = vpop.f32.mrf.mxu0
    %v724 = vadd.f32 0.0, %v723
    %v725 = vpop.f32.mrf.mxu0
    %v726 = vpop.f32.mrf.mxu0
    %v727 = vadd.f32 0.0, %v726
    %v728 = vpop.f32.mrf.mxu0
    %729 = vmatprep.mubr.bf16.mxu0 0
    %730 = vmatmul.mubr.bf16.gmra.mxu0 %v142
    %v731 = vpop.f32.mrf.mxu0
    %v732 = vadd.f32 0.0, %v731
    %v733 = vpop.f32.mrf.mxu0
    %v734 = vpop.f32.mrf.mxu0
    %v735 = vadd.f32 0.0, %v734
    %v736 = vpop.f32.mrf.mxu0
    %737 = vmatprep.mubr.bf16.mxu0 0
    %738 = vmatmul.mubr.bf16.gmra.mxu0 %v143
    %v739 = vpop.f32.mrf.mxu0
    %v740 = vadd.f32 0.0, %v739
    %v741 = vpop.f32.mrf.mxu0
    %v742 = vpop.f32.mrf.mxu0
    %v743 = vadd.f32 0.0, %v742
    %v744 = vpop.f32.mrf.mxu0
    %745 = vmatprep.mubr.bf16.mxu0 0
    %746 = vmatmul.mubr.bf16.gmra.mxu0 %v144
    %v747 = vpop.f32.mrf.mxu0
    %v748 = vadd.f32 0.0, %v747
    %v749 = vpop.f32.mrf.mxu0
    %v750 = vpop.f32.mrf.mxu0
    %v751 = vadd.f32 0.0, %v750
    %v752 = vpop.f32.mrf.mxu0
    %753 = vmatprep.mubr.bf16.mxu0 0
    %754 = vmatmul.mubr.bf16.gmra.mxu0 %v145
    %v755 = vpop.f32.mrf.mxu0
    %v756 = vadd.f32 0.0, %v755
    %v757 = vpop.f32.mrf.mxu0
    %v758 = vpop.f32.mrf.mxu0
    %v759 = vadd.f32 0.0, %v758
    %v760 = vpop.f32.mrf.mxu0
    %761 = vmatprep.mubr.bf16.mxu0 0
    %762 = vmatmul.mubr.bf16.gmra.mxu0 %v146
    %v763 = vpop.f32.mrf.mxu0
    %v764 = vadd.f32 0.0, %v763
    %v765 = vpop.f32.mrf.mxu0
    %v766 = vpop.f32.mrf.mxu0
    %v767 = vadd.f32 0.0, %v766
    %v768 = vpop.f32.mrf.mxu0
    %769 = vmatprep.mubr.bf16.mxu0 0
    %770 = vmatmul.mubr.bf16.gmra.mxu0 %v147
    %v771 = vpop.f32.mrf.mxu0
    %v772 = vadd.f32 0.0, %v771
    %v773 = vpop.f32.mrf.mxu0
    %v774 = vpop.f32.mrf.mxu0
    %v775 = vadd.f32 0.0, %v774
    %v776 = vpop.f32.mrf.mxu0
    %777 = vmatprep.mubr.bf16.mxu0 0
    %778 = vmatmul.mubr.bf16.gmra.mxu0 %v148
    %v779 = vpop.f32.mrf.mxu0
    %v780 = vadd.f32 0.0, %v779
    %v781 = vpop.f32.mrf.mxu0
    %v782 = vpop.f32.mrf.mxu0
    %v783 = vadd.f32 0.0, %v782
    %v784 = vpop.f32.mrf.mxu0
    %785 = vdwg.mxu0
    %v786 = vpack.c.bf16 %v727, %v724
    %v787 = vpack.c.bf16 %v735, %v732
    %v788 = vpack.c.bf16 %v743, %v740
    %v789 = vpack.c.bf16 %v751, %v748
    %v790 = vpack.c.bf16 %v759, %v756
    %v791 = vpack.c.bf16 %v767, %v764
    %v792 = vpack.c.bf16 %v775, %v772
    %v793 = vpack.c.bf16 %v783, %v780
    %v802 = vunpack.c.l.b16 %v786
    %v803 = vunpack.c.h.b16 %v786
    %v804 = vunpack.c.l.b16 %v787
    %v805 = vunpack.c.h.b16 %v787
    %v806 = vunpack.c.l.b16 %v788
    %v807 = vunpack.c.h.b16 %v788
    %v808 = vunpack.c.l.b16 %v789
    %v809 = vunpack.c.h.b16 %v789
    %v810 = vunpack.c.l.b16 %v790
    %v811 = vunpack.c.h.b16 %v790
    %v812 = vunpack.c.l.b16 %v791
    %v813 = vunpack.c.h.b16 %v791
    %v814 = vunpack.c.l.b16 %v792
    %v815 = vunpack.c.h.b16 %v792
    %v816 = vunpack.c.l.b16 %v793
    %v817 = vunpack.c.h.b16 %v793
    %v818 = vpack.c.b16 %v802, %v802
    %v819 = vpack.c.b16 %v803, %v803
    %v820 = vpack.c.b16 %v804, %v804
    %v821 = vpack.c.b16 %v805, %v805
    %v822 = vpack.c.b16 %v806, %v806
    %v823 = vpack.c.b16 %v807, %v807
    %v824 = vpack.c.b16 %v808, %v808
    %v825 = vpack.c.b16 %v809, %v809
    %v826 = vpack.c.b16 %v810, %v810
    %v827 = vpack.c.b16 %v811, %v811
    %v828 = vpack.c.b16 %v812, %v812
    %v829 = vpack.c.b16 %v813, %v813
    %v830 = vpack.c.b16 %v814, %v814
    %v831 = vpack.c.b16 %v815, %v815
    %v832 = vpack.c.b16 %v816, %v816
    %v833 = vpack.c.b16 %v817, %v817
    %850 = vst [vmem:[#allocation2 + $0x80] sm:$0xf] %v818
    %851 = vst [vmem:[#allocation2 + $0x84] sm:$0xf] %v819
    %852 = vst [vmem:[#allocation2 + $0x88] sm:$0xf] %v820
    %853 = vst [vmem:[#allocation2 + $0x8c] sm:$0xf] %v821
    %854 = vst [vmem:[#allocation2 + $0x90] sm:$0xf] %v822
    %855 = vst [vmem:[#allocation2 + $0x94] sm:$0xf] %v823
    %856 = vst [vmem:[#allocation2 + $0x98] sm:$0xf] %v824
    %857 = vst [vmem:[#allocation2 + $0x9c] sm:$0xf] %v825
    %858 = vst [vmem:[#allocation2 + $0xa0] sm:$0xf] %v826
    %859 = vst [vmem:[#allocation2 + $0xa4] sm:$0xf] %v827
    %860 = vst [vmem:[#allocation2 + $0xa8] sm:$0xf] %v828
    %861 = vst [vmem:[#allocation2 + $0xac] sm:$0xf] %v829
    %862 = vst [vmem:[#allocation2 + $0xb0] sm:$0xf] %v830
    %863 = vst [vmem:[#allocation2 + $0xb4] sm:$0xf] %v831
    %864 = vst [vmem:[#allocation2 + $0xb8] sm:$0xf] %v832
    %865 = vst [vmem:[#allocation2 + $0xbc] sm:$0xf] %v833
    %v866 = vld [vmem:[#allocation6] sm:$0xff]
    %v867 = vld [vmem:[#allocation6 + $0x8] sm:$0xf]
    %v868 = vld [vmem:[#allocation6 + $0xc] sm:$0xff]
    %v869 = vld [vmem:[#allocation6 + $0x14] sm:$0xf]
    %v870 = vld [vmem:[#allocation6 + $0x18] sm:$0xff]
    %v871 = vld [vmem:[#allocation6 + $0x20] sm:$0xf]
    %v872 = vld [vmem:[#allocation6 + $0x24] sm:$0xff]
    %v873 = vld [vmem:[#allocation6 + $0x2c] sm:$0xf]
    %v874 = vld [vmem:[#allocation6 + $0x30] sm:$0xff]
    %v875 = vld [vmem:[#allocation6 + $0x38] sm:$0xf]
    %v876 = vld [vmem:[#allocation6 + $0x3c] sm:$0xff]
    %v877 = vld [vmem:[#allocation6 + $0x44] sm:$0xf]
    %v878 = vld [vmem:[#allocation6 + $0x48] sm:$0xff]
    %v879 = vld [vmem:[#allocation6 + $0x50] sm:$0xf]
    %v880 = vld [vmem:[#allocation6 + $0x54] sm:$0xff]
    %v881 = vld [vmem:[#allocation6 + $0x5c] sm:$0xf]
    %v882 = vld [vmem:[#allocation6 + $0x60] sm:$0xff]
    %v883 = vld [vmem:[#allocation6 + $0x68] sm:$0xf]
    %v884 = vld [vmem:[#allocation6 + $0x6c] sm:$0xff]
    %v885 = vld [vmem:[#allocation6 + $0x74] sm:$0xf]
    %v886 = vld [vmem:[#allocation6 + $0x78] sm:$0xff]
    %v887 = vld [vmem:[#allocation6 + $0x80] sm:$0xf]
    %v888 = vld [vmem:[#allocation6 + $0x84] sm:$0xff]
    %v889 = vld [vmem:[#allocation6 + $0x8c] sm:$0xf]
    %v890 = vld [vmem:[#allocation6 + $0x90] sm:$0xff]
    %v891 = vld [vmem:[#allocation6 + $0x98] sm:$0xf]
    %v892 = vld [vmem:[#allocation6 + $0x9c] sm:$0xff]
    %v893 = vld [vmem:[#allocation6 + $0xa4] sm:$0xf]
    %v894 = vld [vmem:[#allocation6 + $0xa8] sm:$0xff]
    %v895 = vld [vmem:[#allocation6 + $0xb0] sm:$0xf]
    %v896 = vld [vmem:[#allocation6 + $0xb4] sm:$0xff]
    %v897 = vld [vmem:[#allocation6 + $0xbc] sm:$0xf]
    %v898 = vld [vmem:[#allocation2] sm:$0xf]
    %v899 = vld [vmem:[#allocation2 + $0x4] sm:$0xf]
    %v900 = vld [vmem:[#allocation2 + $0x8] sm:$0xf]
    %v901 = vld [vmem:[#allocation2 + $0xc] sm:$0xf]
    %v902 = vld [vmem:[#allocation2 + $0x10] sm:$0xf]
    %v903 = vld [vmem:[#allocation2 + $0x14] sm:$0xf]
    %v904 = vld [vmem:[#allocation2 + $0x18] sm:$0xf]
    %v905 = vld [vmem:[#allocation2 + $0x1c] sm:$0xf]
    %v906 = vld [vmem:[#allocation2 + $0x20] sm:$0xf]
    %v907 = vld [vmem:[#allocation2 + $0x24] sm:$0xf]
    %v908 = vld [vmem:[#allocation2 + $0x28] sm:$0xf]
    %v909 = vld [vmem:[#allocation2 + $0x2c] sm:$0xf]
    %v910 = vld [vmem:[#allocation2 + $0x30] sm:$0xf]
    %v911 = vld [vmem:[#allocation2 + $0x34] sm:$0xf]
    %v912 = vld [vmem:[#allocation2 + $0x38] sm:$0xf]
    %v913 = vld [vmem:[#allocation2 + $0x3c] sm:$0xf]
    %v914 = vld [vmem:[#allocation2 + $0x40] sm:$0xf]
    %v915 = vld [vmem:[#allocation2 + $0x44] sm:$0xf]
    %v916 = vld [vmem:[#allocation2 + $0x48] sm:$0xf]
    %v917 = vld [vmem:[#allocation2 + $0x4c] sm:$0xf]
    %v918 = vld [vmem:[#allocation2 + $0x50] sm:$0xf]
    %v919 = vld [vmem:[#allocation2 + $0x54] sm:$0xf]
    %v920 = vld [vmem:[#allocation2 + $0x58] sm:$0xf]
    %v921 = vld [vmem:[#allocation2 + $0x5c] sm:$0xf]
    %v922 = vld [vmem:[#allocation2 + $0x60] sm:$0xf]
    %v923 = vld [vmem:[#allocation2 + $0x64] sm:$0xf]
    %v924 = vld [vmem:[#allocation2 + $0x68] sm:$0xf]
    %v925 = vld [vmem:[#allocation2 + $0x6c] sm:$0xf]
    %v926 = vld [vmem:[#allocation2 + $0x70] sm:$0xf]
    %v927 = vld [vmem:[#allocation2 + $0x74] sm:$0xf]
    %v928 = vld [vmem:[#allocation2 + $0x78] sm:$0xf]
    %v929 = vld [vmem:[#allocation2 + $0x7c] sm:$0xf]
    %v930 = vld [vmem:[#allocation2 + $0x80] sm:$0xf]
    %v931 = vld [vmem:[#allocation2 + $0x84] sm:$0xf]
    %v932 = vld [vmem:[#allocation2 + $0x88] sm:$0xf]
    %v933 = vld [vmem:[#allocation2 + $0x8c] sm:$0xf]
    %v934 = vld [vmem:[#allocation2 + $0x90] sm:$0xf]
    %v935 = vld [vmem:[#allocation2 + $0x94] sm:$0xf]
    %v936 = vld [vmem:[#allocation2 + $0x98] sm:$0xf]
    %v937 = vld [vmem:[#allocation2 + $0x9c] sm:$0xf]
    %v938 = vld [vmem:[#allocation2 + $0xa0] sm:$0xf]
    %v939 = vld [vmem:[#allocation2 + $0xa4] sm:$0xf]
    %v940 = vld [vmem:[#allocation2 + $0xa8] sm:$0xf]
    %v941 = vld [vmem:[#allocation2 + $0xac] sm:$0xf]
    %v942 = vld [vmem:[#allocation2 + $0xb0] sm:$0xf]
    %v943 = vld [vmem:[#allocation2 + $0xb4] sm:$0xf]
    %v944 = vld [vmem:[#allocation2 + $0xb8] sm:$0xf]
    %v945 = vld [vmem:[#allocation2 + $0xbc] sm:$0xf]
    %v946 = vld [vmem:[#allocation9] sm:$0xf]
    %v947 = vld [vmem:[#allocation9 + $0x4] sm:$0xf]
    %v948 = vld [vmem:[#allocation9 + $0x8] sm:$0xf]
    %v949 = vld [vmem:[#allocation9 + $0xc] sm:$0xf]
    %v950 = vld [vmem:[#allocation9 + $0x10] sm:$0xf]
    %v951 = vld [vmem:[#allocation9 + $0x14] sm:$0xf]
    %v952 = vld [vmem:[#allocation9 + $0x18] sm:$0xf]
    %v953 = vld [vmem:[#allocation9 + $0x1c] sm:$0xf]
    %v954 = vld [vmem:[#allocation9 + $0x20] sm:$0xf]
    %v955 = vld [vmem:[#allocation9 + $0x24] sm:$0xf]
    %v956 = vld [vmem:[#allocation9 + $0x28] sm:$0xf]
    %v957 = vld [vmem:[#allocation9 + $0x2c] sm:$0xf]
    %v958 = vld [vmem:[#allocation9 + $0x30] sm:$0xf]
    %v959 = vld [vmem:[#allocation9 + $0x34] sm:$0xf]
    %v960 = vld [vmem:[#allocation9 + $0x38] sm:$0xf]
    %v961 = vld [vmem:[#allocation9 + $0x3c] sm:$0xf]
    %v978 = vunpack.c.l.b16 %v946
    %v979 = vunpack.c.l.b16 %v947
    %v980 = vunpack.c.l.b16 %v948
    %v981 = vunpack.c.l.b16 %v949
    %v982 = vunpack.c.l.b16 %v950
    %v983 = vunpack.c.l.b16 %v951
    %v984 = vunpack.c.l.b16 %v952
    %v985 = vunpack.c.l.b16 %v953
    %v986 = vunpack.c.l.b16 %v954
    %v987 = vunpack.c.l.b16 %v955
    %v988 = vunpack.c.l.b16 %v956
    %v989 = vunpack.c.l.b16 %v957
    %v990 = vunpack.c.l.b16 %v958
    %v991 = vunpack.c.l.b16 %v959
    %v992 = vunpack.c.l.b16 %v960
    %v993 = vunpack.c.l.b16 %v961
    %v994 = vpack.c.b16 %v979, %v978
    %v995 = vpack.c.b16 %v981, %v980
    %v996 = vpack.c.b16 %v983, %v982
    %v997 = vpack.c.b16 %v985, %v984
    %v998 = vpack.c.b16 %v987, %v986
    %v999 = vpack.c.b16 %v989, %v988
    %v1000 = vpack.c.b16 %v991, %v990
    %v1001 = vpack.c.b16 %v993, %v992
    %1010 = vmatprep.subr.bf16.mxu0 0
    %1011 = vmatpush1.bf16.msra.mxu0 %v1001
    %1012 = vmatprep.subr.bf16.mxu0 0
    %1013 = vmatpush1.bf16.msra.mxu0 %v1000
    %1014 = vmatprep.subr.bf16.mxu0 0
    %1015 = vmatpush1.bf16.msra.mxu0 %v999
    %1016 = vmatprep.subr.bf16.mxu0 0
    %1017 = vmatpush1.bf16.msra.mxu0 %v998
    %1018 = vmatprep.subr.bf16.mxu0 0
    %1019 = vmatpush1.bf16.msra.mxu0 %v997
    %1020 = vmatprep.subr.bf16.mxu0 0
    %1021 = vmatpush1.bf16.msra.mxu0 %v996
    %1022 = vmatprep.subr.bf16.mxu0 0
    %1023 = vmatpush1.bf16.msra.mxu0 %v995
    %1024 = vmatprep.subr.bf16.mxu0 0
    %1025 = vmatpush1.bf16.msra.mxu0 %v994
    %1026 = vmatprep.subr.bf16.mxu0 0
    %1027 = vmatpush2.bf16.msra.mxu0 0
    %1028 = vmatprep.subr.bf16.mxu0 0
    %1029 = vmatpush2.bf16.msra.mxu0 0
    %1030 = vmatprep.subr.bf16.mxu0 0
    %1031 = vmatpush2.bf16.msra.mxu0 0
    %1032 = vmatprep.subr.bf16.mxu0 0
    %1033 = vmatpush2.bf16.msra.mxu0 0
    %1034 = vmatprep.subr.bf16.mxu0 0
    %1035 = vmatpush2.bf16.msra.mxu0 0
    %1036 = vmatprep.subr.bf16.mxu0 0
    %1037 = vmatpush2.bf16.msra.mxu0 0
    %1038 = vmatprep.subr.bf16.mxu0 0
    %1039 = vmatpush2.bf16.msra.mxu0 0
    %1040 = vmatprep.subr.bf16.mxu0 0
    %1041 = vmatpush2.bf16.msra.mxu0 0
    %1042 = vmatprep.mubr.bf16.mxu0 0
    %1043 = vmatmul.mubr.bf16.gmra.mxu0 %v141
    %v1044 = vpop.f32.mrf.mxu0
    %v1045 = vadd.f32 0.0, %v1044
    %v1046 = vpop.f32.mrf.mxu0
    %v1047 = vpop.f32.mrf.mxu0
    %v1048 = vadd.f32 0.0, %v1047
    %v1049 = vpop.f32.mrf.mxu0
    %1050 = vmatprep.mubr.bf16.mxu0 0
    %1051 = vmatmul.mubr.bf16.gmra.mxu0 %v142
    %v1052 = vpop.f32.mrf.mxu0
    %v1053 = vadd.f32 0.0, %v1052
    %v1054 = vpop.f32.mrf.mxu0
    %v1055 = vpop.f32.mrf.mxu0
    %v1056 = vadd.f32 0.0, %v1055
    %v1057 = vpop.f32.mrf.mxu0
    %1058 = vmatprep.mubr.bf16.mxu0 0
    %1059 = vmatmul.mubr.bf16.gmra.mxu0 %v143
    %v1060 = vpop.f32.mrf.mxu0
    %v1061 = vadd.f32 0.0, %v1060
    %v1062 = vpop.f32.mrf.mxu0
    %v1063 = vpop.f32.mrf.mxu0
    %v1064 = vadd.f32 0.0, %v1063
    %v1065 = vpop.f32.mrf.mxu0
    %1066 = vmatprep.mubr.bf16.mxu0 0
    %1067 = vmatmul.mubr.bf16.gmra.mxu0 %v144
    %v1068 = vpop.f32.mrf.mxu0
    %v1069 = vadd.f32 0.0, %v1068
    %v1070 = vpop.f32.mrf.mxu0
    %v1071 = vpop.f32.mrf.mxu0
    %v1072 = vadd.f32 0.0, %v1071
    %v1073 = vpop.f32.mrf.mxu0
    %1074 = vmatprep.mubr.bf16.mxu0 0
    %1075 = vmatmul.mubr.bf16.gmra.mxu0 %v145
    %v1076 = vpop.f32.mrf.mxu0
    %v1077 = vadd.f32 0.0, %v1076
    %v1078 = vpop.f32.mrf.mxu0
    %v1079 = vpop.f32.mrf.mxu0
    %v1080 = vadd.f32 0.0, %v1079
    %v1081 = vpop.f32.mrf.mxu0
    %1082 = vmatprep.mubr.bf16.mxu0 0
    %1083 = vmatmul.mubr.bf16.gmra.mxu0 %v146
    %v1084 = vpop.f32.mrf.mxu0
    %v1085 = vadd.f32 0.0, %v1084
    %v1086 = vpop.f32.mrf.mxu0
    %v1087 = vpop.f32.mrf.mxu0
    %v1088 = vadd.f32 0.0, %v1087
    %v1089 = vpop.f32.mrf.mxu0
    %1090 = vmatprep.mubr.bf16.mxu0 0
    %1091 = vmatmul.mubr.bf16.gmra.mxu0 %v147
    %v1092 = vpop.f32.mrf.mxu0
    %v1093 = vadd.f32 0.0, %v1092
    %v1094 = vpop.f32.mrf.mxu0
    %v1095 = vpop.f32.mrf.mxu0
    %v1096 = vadd.f32 0.0, %v1095
    %v1097 = vpop.f32.mrf.mxu0
    %1098 = vmatprep.mubr.bf16.mxu0 0
    %1099 = vmatmul.mubr.bf16.gmra.mxu0 %v148
    %v1100 = vpop.f32.mrf.mxu0
    %v1101 = vadd.f32 0.0, %v1100
    %v1102 = vpop.f32.mrf.mxu0
    %v1103 = vpop.f32.mrf.mxu0
    %v1104 = vadd.f32 0.0, %v1103
    %v1105 = vpop.f32.mrf.mxu0
    %1106 = vdwg.mxu0
    %v1139 = vunpack.c.l.b16 %v866
    %v1140 = vunpack.c.h.b16 %v866
    %v1141 = vunpack.c.l.b16 %v867
    %v1142 = vunpack.c.l.b16 %v868
    %v1143 = vunpack.c.h.b16 %v868
    %v1144 = vunpack.c.l.b16 %v869
    %v1145 = vunpack.c.l.b16 %v870
    %v1146 = vunpack.c.h.b16 %v870
    %v1147 = vunpack.c.l.b16 %v871
    %v1148 = vunpack.c.l.b16 %v872
    %v1149 = vunpack.c.h.b16 %v872
    %v1150 = vunpack.c.l.b16 %v873
    %v1151 = vunpack.c.l.b16 %v874
    %v1152 = vunpack.c.h.b16 %v874
    %v1153 = vunpack.c.l.b16 %v875
    %v1154 = vunpack.c.l.b16 %v876
    %v1155 = vunpack.c.h.b16 %v876
    %v1156 = vunpack.c.l.b16 %v877
    %v1157 = vunpack.c.l.b16 %v878
    %v1158 = vunpack.c.h.b16 %v878
    %v1159 = vunpack.c.l.b16 %v879
    %v1160 = vunpack.c.l.b16 %v880
    %v1161 = vunpack.c.h.b16 %v880
    %v1162 = vunpack.c.l.b16 %v881
    %v1163 = vunpack.c.l.b16 %v882
    %v1164 = vunpack.c.h.b16 %v882
    %v1165 = vunpack.c.l.b16 %v883
    %v1166 = vunpack.c.l.b16 %v884
    %v1167 = vunpack.c.h.b16 %v884
    %v1168 = vunpack.c.l.b16 %v885
    %v1169 = vunpack.c.l.b16 %v886
    %v1170 = vunpack.c.h.b16 %v886
    %v1171 = vunpack.c.l.b16 %v887
    %v1172 = vunpack.c.l.b16 %v888
    %v1173 = vunpack.c.h.b16 %v888
    %v1174 = vunpack.c.l.b16 %v889
    %v1175 = vunpack.c.l.b16 %v890
    %v1176 = vunpack.c.h.b16 %v890
    %v1177 = vunpack.c.l.b16 %v891
    %v1178 = vunpack.c.l.b16 %v892
    %v1179 = vunpack.c.h.b16 %v892
    %v1180 = vunpack.c.l.b16 %v893
    %v1181 = vunpack.c.l.b16 %v894
    %v1182 = vunpack.c.h.b16 %v894
    %v1183 = vunpack.c.l.b16 %v895
    %v1184 = vunpack.c.l.b16 %v896
    %v1185 = vunpack.c.h.b16 %v896
    %v1186 = vunpack.c.l.b16 %v897
    %v1187 = vpack.c.b16 %v1142, %v1139
    %v1188 = vpack.c.b16 %v1143, %v1140
    %v1189 = vpack.c.b16 %v1144, %v1141
    %v1190 = vpack.c.b16 %v1148, %v1145
    %v1191 = vpack.c.b16 %v1149, %v1146
    %v1192 = vpack.c.b16 %v1150, %v1147
    %v1193 = vpack.c.b16 %v1154, %v1151
    %v1194 = vpack.c.b16 %v1155, %v1152
    %v1195 = vpack.c.b16 %v1156, %v1153
    %v1196 = vpack.c.b16 %v1160, %v1157
    %v1197 = vpack.c.b16 %v1161, %v1158
    %v1198 = vpack.c.b16 %v1162, %v1159
    %v1199 = vpack.c.b16 %v1166, %v1163
    %v1200 = vpack.c.b16 %v1167, %v1164
    %v1201 = vpack.c.b16 %v1168, %v1165
    %v1202 = vpack.c.b16 %v1172, %v1169
    %v1203 = vpack.c.b16 %v1173, %v1170
    %v1204 = vpack.c.b16 %v1174, %v1171
    %v1205 = vpack.c.b16 %v1178, %v1175
    %v1206 = vpack.c.b16 %v1179, %v1176
    %v1207 = vpack.c.b16 %v1180, %v1177
    %v1208 = vpack.c.b16 %v1184, %v1181
    %v1209 = vpack.c.b16 %v1185, %v1182
    %v1210 = vpack.c.b16 %v1186, %v1183
    %v1283 = vunpack.c.l.b16 %v898
    %v1284 = vunpack.c.l.b16 %v899
    %v1285 = vunpack.c.l.b16 %v900
    %v1286 = vunpack.c.l.b16 %v901
    %v1287 = vunpack.c.l.b16 %v902
    %v1288 = vunpack.c.l.b16 %v903
    %v1289 = vunpack.c.l.b16 %v904
    %v1290 = vunpack.c.l.b16 %v905
    %v1291 = vunpack.c.l.b16 %v906
    %v1292 = vunpack.c.l.b16 %v907
    %v1293 = vunpack.c.l.b16 %v908
    %v1294 = vunpack.c.l.b16 %v909
    %v1295 = vunpack.c.l.b16 %v910
    %v1296 = vunpack.c.l.b16 %v911
    %v1297 = vunpack.c.l.b16 %v912
    %v1298 = vunpack.c.l.b16 %v913
    %v1299 = vunpack.c.l.b16 %v914
    %v1300 = vunpack.c.l.b16 %v915
    %v1301 = vunpack.c.l.b16 %v916
    %v1302 = vunpack.c.l.b16 %v917
    %v1303 = vunpack.c.l.b16 %v918
    %v1304 = vunpack.c.l.b16 %v919
    %v1305 = vunpack.c.l.b16 %v920
    %v1306 = vunpack.c.l.b16 %v921
    %v1307 = vunpack.c.l.b16 %v922
    %v1308 = vunpack.c.l.b16 %v923
    %v1309 = vunpack.c.l.b16 %v924
    %v1310 = vunpack.c.l.b16 %v925
    %v1311 = vunpack.c.l.b16 %v926
    %v1312 = vunpack.c.l.b16 %v927
    %v1313 = vunpack.c.l.b16 %v928
    %v1314 = vunpack.c.l.b16 %v929
    %v1315 = vunpack.c.l.b16 %v930
    %v1316 = vunpack.c.l.b16 %v931
    %v1317 = vunpack.c.l.b16 %v932
    %v1318 = vunpack.c.l.b16 %v933
    %v1319 = vunpack.c.l.b16 %v934
    %v1320 = vunpack.c.l.b16 %v935
    %v1321 = vunpack.c.l.b16 %v936
    %v1322 = vunpack.c.l.b16 %v937
    %v1323 = vunpack.c.l.b16 %v938
    %v1324 = vunpack.c.l.b16 %v939
    %v1325 = vunpack.c.l.b16 %v940
    %v1326 = vunpack.c.l.b16 %v941
    %v1327 = vunpack.c.l.b16 %v942
    %v1328 = vunpack.c.l.b16 %v943
    %v1329 = vunpack.c.l.b16 %v944
    %v1330 = vunpack.c.l.b16 %v945
    %v1331 = vpack.c.b16 %v1284, %v1283
    %v1332 = vpack.c.b16 %v1286, %v1285
    %v1333 = vpack.c.b16 %v1288, %v1287
    %v1334 = vpack.c.b16 %v1290, %v1289
    %v1335 = vpack.c.b16 %v1292, %v1291
    %v1336 = vpack.c.b16 %v1294, %v1293
    %v1337 = vpack.c.b16 %v1296, %v1295
    %v1338 = vpack.c.b16 %v1298, %v1297
    %v1339 = vpack.c.b16 %v1300, %v1299
    %v1340 = vpack.c.b16 %v1302, %v1301
    %v1341 = vpack.c.b16 %v1304, %v1303
    %v1342 = vpack.c.b16 %v1306, %v1305
    %v1343 = vpack.c.b16 %v1308, %v1307
    %v1344 = vpack.c.b16 %v1310, %v1309
    %v1345 = vpack.c.b16 %v1312, %v1311
    %v1346 = vpack.c.b16 %v1314, %v1313
    %v1347 = vpack.c.b16 %v1316, %v1315
    %v1348 = vpack.c.b16 %v1318, %v1317
    %v1349 = vpack.c.b16 %v1320, %v1319
    %v1350 = vpack.c.b16 %v1322, %v1321
    %v1351 = vpack.c.b16 %v1324, %v1323
    %v1352 = vpack.c.b16 %v1326, %v1325
    %v1353 = vpack.c.b16 %v1328, %v1327
    %v1354 = vpack.c.b16 %v1330, %v1329
    %1379 = vmatprep.subr.bf16.mxu0 0
    %1380 = vmatpush1.bf16.msra.mxu0 %v1338
    %1381 = vmatprep.subr.bf16.mxu0 0
    %1382 = vmatpush1.bf16.msra.mxu0 %v1337
    %1383 = vmatprep.subr.bf16.mxu0 0
    %1384 = vmatpush1.bf16.msra.mxu0 %v1336
    %1385 = vmatprep.subr.bf16.mxu0 0
    %1386 = vmatpush1.bf16.msra.mxu0 %v1335
    %1387 = vmatprep.subr.bf16.mxu0 0
    %1388 = vmatpush1.bf16.msra.mxu0 %v1334
    %1389 = vmatprep.subr.bf16.mxu0 0
    %1390 = vmatpush1.bf16.msra.mxu0 %v1333
    %1391 = vmatprep.subr.bf16.mxu0 0
    %1392 = vmatpush1.bf16.msra.mxu0 %v1332
    %1393 = vmatprep.subr.bf16.mxu0 0
    %1394 = vmatpush1.bf16.msra.mxu0 %v1331
    %1395 = vmatprep.subr.bf16.mxu0 0
    %1396 = vmatpush2.bf16.msra.mxu0 %v1346
    %1397 = vmatprep.subr.bf16.mxu0 0
    %1398 = vmatpush2.bf16.msra.mxu0 %v1345
    %1399 = vmatprep.subr.bf16.mxu0 0
    %1400 = vmatpush2.bf16.msra.mxu0 %v1344
    %1401 = vmatprep.subr.bf16.mxu0 0
    %1402 = vmatpush2.bf16.msra.mxu0 %v1343
    %1403 = vmatprep.subr.bf16.mxu0 0
    %1404 = vmatpush2.bf16.msra.mxu0 %v1342
    %1405 = vmatprep.subr.bf16.mxu0 0
    %1406 = vmatpush2.bf16.msra.mxu0 %v1341
    %1407 = vmatprep.subr.bf16.mxu0 0
    %1408 = vmatpush2.bf16.msra.mxu0 %v1340
    %1409 = vmatprep.subr.bf16.mxu0 0
    %1410 = vmatpush2.bf16.msra.mxu0 %v1339
    %1411 = vmatprep.mubr.bf16.mxu0 %v1188
    %1412 = vmatmul.mubr.bf16.gmra.mxu0 %v1187
    %v1413 = vpop.f32.mrf.mxu0
    %v1414 = vadd.f32 %v1045, %v1413
    %v1415 = vpop.f32.mrf.mxu0
    %v1416 = vpop.f32.mrf.mxu0
    %v1417 = vadd.f32 %v1048, %v1416
    %v1418 = vpop.f32.mrf.mxu0
    %1419 = vmatprep.mubr.bf16.mxu0 %v1191
    %1420 = vmatmul.mubr.bf16.gmra.mxu0 %v1190
    %v1421 = vpop.f32.mrf.mxu0
    %v1422 = vadd.f32 %v1053, %v1421
    %v1423 = vpop.f32.mrf.mxu0
    %v1424 = vpop.f32.mrf.mxu0
    %v1425 = vadd.f32 %v1056, %v1424
    %v1426 = vpop.f32.mrf.mxu0
    %1427 = vmatprep.mubr.bf16.mxu0 %v1194
    %1428 = vmatmul.mubr.bf16.gmra.mxu0 %v1193
    %v1429 = vpop.f32.mrf.mxu0
    %v1430 = vadd.f32 %v1061, %v1429
    %v1431 = vpop.f32.mrf.mxu0
    %v1432 = vpop.f32.mrf.mxu0
    %v1433 = vadd.f32 %v1064, %v1432
    %v1434 = vpop.f32.mrf.mxu0
    %1435 = vmatprep.mubr.bf16.mxu0 %v1197
    %1436 = vmatmul.mubr.bf16.gmra.mxu0 %v1196
    %v1437 = vpop.f32.mrf.mxu0
    %v1438 = vadd.f32 %v1069, %v1437
    %v1439 = vpop.f32.mrf.mxu0
    %v1440 = vpop.f32.mrf.mxu0
    %v1441 = vadd.f32 %v1072, %v1440
    %v1442 = vpop.f32.mrf.mxu0
    %1443 = vmatprep.mubr.bf16.mxu0 %v1200
    %1444 = vmatmul.mubr.bf16.gmra.mxu0 %v1199
    %v1445 = vpop.f32.mrf.mxu0
    %v1446 = vadd.f32 %v1077, %v1445
    %v1447 = vpop.f32.mrf.mxu0
    %v1448 = vpop.f32.mrf.mxu0
    %v1449 = vadd.f32 %v1080, %v1448
    %v1450 = vpop.f32.mrf.mxu0
    %1451 = vmatprep.mubr.bf16.mxu0 %v1203
    %1452 = vmatmul.mubr.bf16.gmra.mxu0 %v1202
    %v1453 = vpop.f32.mrf.mxu0
    %v1454 = vadd.f32 %v1085, %v1453
    %v1455 = vpop.f32.mrf.mxu0
    %v1456 = vpop.f32.mrf.mxu0
    %v1457 = vadd.f32 %v1088, %v1456
    %v1458 = vpop.f32.mrf.mxu0
    %1459 = vmatprep.mubr.bf16.mxu0 %v1206
    %1460 = vmatmul.mubr.bf16.gmra.mxu0 %v1205
    %v1461 = vpop.f32.mrf.mxu0
    %v1462 = vadd.f32 %v1093, %v1461
    %v1463 = vpop.f32.mrf.mxu0
    %v1464 = vpop.f32.mrf.mxu0
    %v1465 = vadd.f32 %v1096, %v1464
    %v1466 = vpop.f32.mrf.mxu0
    %1467 = vmatprep.mubr.bf16.mxu0 %v1209
    %1468 = vmatmul.mubr.bf16.gmra.mxu0 %v1208
    %v1469 = vpop.f32.mrf.mxu0
    %v1470 = vadd.f32 %v1101, %v1469
    %v1471 = vpop.f32.mrf.mxu0
    %v1472 = vpop.f32.mrf.mxu0
    %v1473 = vadd.f32 %v1104, %v1472
    %v1474 = vpop.f32.mrf.mxu0
    %1475 = vdwg.mxu0
    %1476 = vmatprep.subr.bf16.mxu0 0
    %1477 = vmatpush1.bf16.msra.mxu0 %v1354
    %1478 = vmatprep.subr.bf16.mxu0 0
    %1479 = vmatpush1.bf16.msra.mxu0 %v1353
    %1480 = vmatprep.subr.bf16.mxu0 0
    %1481 = vmatpush1.bf16.msra.mxu0 %v1352
    %1482 = vmatprep.subr.bf16.mxu0 0
    %1483 = vmatpush1.bf16.msra.mxu0 %v1351
    %1484 = vmatprep.subr.bf16.mxu0 0
    %1485 = vmatpush1.bf16.msra.mxu0 %v1350
    %1486 = vmatprep.subr.bf16.mxu0 0
    %1487 = vmatpush1.bf16.msra.mxu0 %v1349
    %1488 = vmatprep.subr.bf16.mxu0 0
    %1489 = vmatpush1.bf16.msra.mxu0 %v1348
    %1490 = vmatprep.subr.bf16.mxu0 0
    %1491 = vmatpush1.bf16.msra.mxu0 %v1347
    %1492 = vmatprep.subr.bf16.mxu0 0
    %1493 = vmatpush2.bf16.msra.mxu0 0
    %1494 = vmatprep.subr.bf16.mxu0 0
    %1495 = vmatpush2.bf16.msra.mxu0 0
    %1496 = vmatprep.subr.bf16.mxu0 0
    %1497 = vmatpush2.bf16.msra.mxu0 0
    %1498 = vmatprep.subr.bf16.mxu0 0
    %1499 = vmatpush2.bf16.msra.mxu0 0
    %1500 = vmatprep.subr.bf16.mxu0 0
    %1501 = vmatpush2.bf16.msra.mxu0 0
    %1502 = vmatprep.subr.bf16.mxu0 0
    %1503 = vmatpush2.bf16.msra.mxu0 0
    %1504 = vmatprep.subr.bf16.mxu0 0
    %1505 = vmatpush2.bf16.msra.mxu0 0
    %1506 = vmatprep.subr.bf16.mxu0 0
    %1507 = vmatpush2.bf16.msra.mxu0 0
    %1508 = vmatprep.mubr.bf16.mxu0 0
    %1509 = vmatmul.mubr.bf16.gmra.mxu0 %v1189
    %v1510 = vpop.f32.mrf.mxu0
    %v1511 = vadd.f32 %v1414, %v1510
    %v1512 = vpop.f32.mrf.mxu0
    %v1513 = vpop.f32.mrf.mxu0
    %v1514 = vadd.f32 %v1417, %v1513
    %v1515 = vpop.f32.mrf.mxu0
    %1516 = vmatprep.mubr.bf16.mxu0 0
    %1517 = vmatmul.mubr.bf16.gmra.mxu0 %v1192
    %v1518 = vpop.f32.mrf.mxu0
    %v1519 = vadd.f32 %v1422, %v1518
    %v1520 = vpop.f32.mrf.mxu0
    %v1521 = vpop.f32.mrf.mxu0
    %v1522 = vadd.f32 %v1425, %v1521
    %v1523 = vpop.f32.mrf.mxu0
    %1524 = vmatprep.mubr.bf16.mxu0 0
    %1525 = vmatmul.mubr.bf16.gmra.mxu0 %v1195
    %v1526 = vpop.f32.mrf.mxu0
    %v1527 = vadd.f32 %v1430, %v1526
    %v1528 = vpop.f32.mrf.mxu0
    %v1529 = vpop.f32.mrf.mxu0
    %v1530 = vadd.f32 %v1433, %v1529
    %v1531 = vpop.f32.mrf.mxu0
    %1532 = vmatprep.mubr.bf16.mxu0 0
    %1533 = vmatmul.mubr.bf16.gmra.mxu0 %v1198
    %v1534 = vpop.f32.mrf.mxu0
    %v1535 = vadd.f32 %v1438, %v1534
    %v1536 = vpop.f32.mrf.mxu0
    %v1537 = vpop.f32.mrf.mxu0
    %v1538 = vadd.f32 %v1441, %v1537
    %v1539 = vpop.f32.mrf.mxu0
    %1540 = vmatprep.mubr.bf16.mxu0 0
    %1541 = vmatmul.mubr.bf16.gmra.mxu0 %v1201
    %v1542 = vpop.f32.mrf.mxu0
    %v1543 = vadd.f32 %v1446, %v1542
    %v1544 = vpop.f32.mrf.mxu0
    %v1545 = vpop.f32.mrf.mxu0
    %v1546 = vadd.f32 %v1449, %v1545
    %v1547 = vpop.f32.mrf.mxu0
    %1548 = vmatprep.mubr.bf16.mxu0 0
    %1549 = vmatmul.mubr.bf16.gmra.mxu0 %v1204
    %v1550 = vpop.f32.mrf.mxu0
    %v1551 = vadd.f32 %v1454, %v1550
    %v1552 = vpop.f32.mrf.mxu0
    %v1553 = vpop.f32.mrf.mxu0
    %v1554 = vadd.f32 %v1457, %v1553
    %v1555 = vpop.f32.mrf.mxu0
    %1556 = vmatprep.mubr.bf16.mxu0 0
    %1557 = vmatmul.mubr.bf16.gmra.mxu0 %v1207
    %v1558 = vpop.f32.mrf.mxu0
    %v1559 = vadd.f32 %v1462, %v1558
    %v1560 = vpop.f32.mrf.mxu0
    %v1561 = vpop.f32.mrf.mxu0
    %v1562 = vadd.f32 %v1465, %v1561
    %v1563 = vpop.f32.mrf.mxu0
    %1564 = vmatprep.mubr.bf16.mxu0 0
    %1565 = vmatmul.mubr.bf16.gmra.mxu0 %v1210
    %v1566 = vpop.f32.mrf.mxu0
    %v1567 = vadd.f32 %v1470, %v1566
    %v1568 = vpop.f32.mrf.mxu0
    %v1569 = vpop.f32.mrf.mxu0
    %v1570 = vadd.f32 %v1473, %v1569
    %v1571 = vpop.f32.mrf.mxu0
    %1572 = vdwg.mxu0
    %v1573 = vld [vmem:[%s4] sm:$0x1]
    %v1575 = vlaneseq
    %v1576 = vshrl.u32 %v1575, 7
    %v1577 = vsub.s32 0, %v1576
    %v1578 = vrot.slane %v1573, %v1577
    %v1580 = vadd.f32 %v1511, %v1578
    %v1581 = vadd.f32 %v1514, %v1578
    %v1582 = vadd.f32 %v1519, %v1578
    %v1583 = vadd.f32 %v1522, %v1578
    %v1584 = vadd.f32 %v1527, %v1578
    %v1585 = vadd.f32 %v1530, %v1578
    %v1586 = vadd.f32 %v1535, %v1578
    %v1587 = vadd.f32 %v1538, %v1578
    %v1588 = vadd.f32 %v1543, %v1578
    %v1589 = vadd.f32 %v1546, %v1578
    %v1590 = vadd.f32 %v1551, %v1578
    %v1591 = vadd.f32 %v1554, %v1578
    %v1592 = vadd.f32 %v1559, %v1578
    %v1593 = vadd.f32 %v1562, %v1578
    %v1594 = vadd.f32 %v1567, %v1578
    %v1595 = vadd.f32 %v1570, %v1578
    %v1596 = vmax.f32 %v1580, 0.0
    %v1597 = vmax.f32 %v1581, 0.0
    %v1598 = vmax.f32 %v1582, 0.0
    %v1599 = vmax.f32 %v1583, 0.0
    %v1600 = vmax.f32 %v1584, 0.0
    %v1601 = vmax.f32 %v1585, 0.0
    %v1602 = vmax.f32 %v1586, 0.0
    %v1603 = vmax.f32 %v1587, 0.0
    %v1604 = vmax.f32 %v1588, 0.0
    %v1605 = vmax.f32 %v1589, 0.0
    %v1606 = vmax.f32 %v1590, 0.0
    %v1607 = vmax.f32 %v1591, 0.0
    %v1608 = vmax.f32 %v1592, 0.0
    %v1609 = vmax.f32 %v1593, 0.0
    %v1610 = vmax.f32 %v1594, 0.0
    %v1611 = vmax.f32 %v1595, 0.0
    %v1612 = vpack.c.bf16 %v1597, %v1596
    %v1613 = vpack.c.bf16 %v1599, %v1598
    %v1614 = vpack.c.bf16 %v1601, %v1600
    %v1615 = vpack.c.bf16 %v1603, %v1602
    %v1616 = vpack.c.bf16 %v1605, %v1604
    %v1617 = vpack.c.bf16 %v1607, %v1606
    %v1618 = vpack.c.bf16 %v1609, %v1608
    %v1619 = vpack.c.bf16 %v1611, %v1610
    %s1620 = scalar_lea.vmem [#allocation8], 192
    %v1621 = vld [vmem:[%s1620] sm:$0xf]
    %v1622 = vld [vmem:[%s1620 + $0x4] sm:$0xf]
    %v1623 = vld [vmem:[%s1620 + $0x8] sm:$0xf]
    %v1624 = vld [vmem:[%s1620 + $0xc] sm:$0xf]
    %v1625 = vld [vmem:[%s1620 + $0x10] sm:$0xf]
    %v1626 = vld [vmem:[%s1620 + $0x14] sm:$0xf]
    %v1627 = vld [vmem:[%s1620 + $0x18] sm:$0xf]
    %v1628 = vld [vmem:[%s1620 + $0x1c] sm:$0xf]
    %v1629 = vld [vmem:[%s1620 + $0x20] sm:$0xf]
    %v1630 = vld [vmem:[%s1620 + $0x24] sm:$0xf]
    %v1631 = vld [vmem:[%s1620 + $0x28] sm:$0xf]
    %v1632 = vld [vmem:[%s1620 + $0x2c] sm:$0xf]
    %v1633 = vld [vmem:[%s1620 + $0x30] sm:$0xf]
    %v1634 = vld [vmem:[%s1620 + $0x34] sm:$0xf]
    %v1635 = vld [vmem:[%s1620 + $0x38] sm:$0xf]
    %v1636 = vld [vmem:[%s1620 + $0x3c] sm:$0xf]
    %v1653 = vunpack.c.l.b16 %v1621
    %v1654 = vunpack.c.l.b16 %v1622
    %v1655 = vunpack.c.l.b16 %v1623
    %v1656 = vunpack.c.l.b16 %v1624
    %v1657 = vunpack.c.l.b16 %v1625
    %v1658 = vunpack.c.l.b16 %v1626
    %v1659 = vunpack.c.l.b16 %v1627
    %v1660 = vunpack.c.l.b16 %v1628
    %v1661 = vunpack.c.l.b16 %v1629
    %v1662 = vunpack.c.l.b16 %v1630
    %v1663 = vunpack.c.l.b16 %v1631
    %v1664 = vunpack.c.l.b16 %v1632
    %v1665 = vunpack.c.l.b16 %v1633
    %v1666 = vunpack.c.l.b16 %v1634
    %v1667 = vunpack.c.l.b16 %v1635
    %v1668 = vunpack.c.l.b16 %v1636
    %v1669 = vpack.c.b16 %v1654, %v1653
    %v1670 = vpack.c.b16 %v1656, %v1655
    %v1671 = vpack.c.b16 %v1658, %v1657
    %v1672 = vpack.c.b16 %v1660, %v1659
    %v1673 = vpack.c.b16 %v1662, %v1661
    %v1674 = vpack.c.b16 %v1664, %v1663
    %v1675 = vpack.c.b16 %v1666, %v1665
    %v1676 = vpack.c.b16 %v1668, %v1667
    %1685 = vmatprep.subr.bf16.mxu0 0
    %1686 = vmatpush1.bf16.msra.mxu0 %v1676
    %1687 = vmatprep.subr.bf16.mxu0 0
    %1688 = vmatpush1.bf16.msra.mxu0 %v1675
    %1689 = vmatprep.subr.bf16.mxu0 0
    %1690 = vmatpush1.bf16.msra.mxu0 %v1674
    %1691 = vmatprep.subr.bf16.mxu0 0
    %1692 = vmatpush1.bf16.msra.mxu0 %v1673
    %1693 = vmatprep.subr.bf16.mxu0 0
    %1694 = vmatpush1.bf16.msra.mxu0 %v1672
    %1695 = vmatprep.subr.bf16.mxu0 0
    %1696 = vmatpush1.bf16.msra.mxu0 %v1671
    %1697 = vmatprep.subr.bf16.mxu0 0
    %1698 = vmatpush1.bf16.msra.mxu0 %v1670
    %1699 = vmatprep.subr.bf16.mxu0 0
    %1700 = vmatpush1.bf16.msra.mxu0 %v1669
    %1701 = vmatprep.subr.bf16.mxu0 0
    %1702 = vmatpush2.bf16.msra.mxu0 0
    %1703 = vmatprep.subr.bf16.mxu0 0
    %1704 = vmatpush2.bf16.msra.mxu0 0
    %1705 = vmatprep.subr.bf16.mxu0 0
    %1706 = vmatpush2.bf16.msra.mxu0 0
    %1707 = vmatprep.subr.bf16.mxu0 0
    %1708 = vmatpush2.bf16.msra.mxu0 0
    %1709 = vmatprep.subr.bf16.mxu0 0
    %1710 = vmatpush2.bf16.msra.mxu0 0
    %1711 = vmatprep.subr.bf16.mxu0 0
    %1712 = vmatpush2.bf16.msra.mxu0 0
    %1713 = vmatprep.subr.bf16.mxu0 0
    %1714 = vmatpush2.bf16.msra.mxu0 0
    %1715 = vmatprep.subr.bf16.mxu0 0
    %1716 = vmatpush2.bf16.msra.mxu0 0
    %1717 = vmatprep.mubr.bf16.mxu0 0
    %1718 = vmatmul.mubr.bf16.gmra.mxu0 %v1612
    %v1719 = vpop.f32.mrf.mxu0
    %v1720 = vadd.f32 0.0, %v1719
    %v1721 = vpop.f32.mrf.mxu0
    %v1722 = vpop.f32.mrf.mxu0
    %v1723 = vadd.f32 0.0, %v1722
    %v1724 = vpop.f32.mrf.mxu0
    %1725 = vmatprep.mubr.bf16.mxu0 0
    %1726 = vmatmul.mubr.bf16.gmra.mxu0 %v1613
    %v1727 = vpop.f32.mrf.mxu0
    %v1728 = vadd.f32 0.0, %v1727
    %v1729 = vpop.f32.mrf.mxu0
    %v1730 = vpop.f32.mrf.mxu0
    %v1731 = vadd.f32 0.0, %v1730
    %v1732 = vpop.f32.mrf.mxu0
    %1733 = vmatprep.mubr.bf16.mxu0 0
    %1734 = vmatmul.mubr.bf16.gmra.mxu0 %v1614
    %v1735 = vpop.f32.mrf.mxu0
    %v1736 = vadd.f32 0.0, %v1735
    %v1737 = vpop.f32.mrf.mxu0
    %v1738 = vpop.f32.mrf.mxu0
    %v1739 = vadd.f32 0.0, %v1738
    %v1740 = vpop.f32.mrf.mxu0
    %1741 = vmatprep.mubr.bf16.mxu0 0
    %1742 = vmatmul.mubr.bf16.gmra.mxu0 %v1615
    %v1743 = vpop.f32.mrf.mxu0
    %v1744 = vadd.f32 0.0, %v1743
    %v1745 = vpop.f32.mrf.mxu0
    %v1746 = vpop.f32.mrf.mxu0
    %v1747 = vadd.f32 0.0, %v1746
    %v1748 = vpop.f32.mrf.mxu0
    %1749 = vmatprep.mubr.bf16.mxu0 0
    %1750 = vmatmul.mubr.bf16.gmra.mxu0 %v1616
    %v1751 = vpop.f32.mrf.mxu0
    %v1752 = vadd.f32 0.0, %v1751
    %v1753 = vpop.f32.mrf.mxu0
    %v1754 = vpop.f32.mrf.mxu0
    %v1755 = vadd.f32 0.0, %v1754
    %v1756 = vpop.f32.mrf.mxu0
    %1757 = vmatprep.mubr.bf16.mxu0 0
    %1758 = vmatmul.mubr.bf16.gmra.mxu0 %v1617
    %v1759 = vpop.f32.mrf.mxu0
    %v1760 = vadd.f32 0.0, %v1759
    %v1761 = vpop.f32.mrf.mxu0
    %v1762 = vpop.f32.mrf.mxu0
    %v1763 = vadd.f32 0.0, %v1762
    %v1764 = vpop.f32.mrf.mxu0
    %1765 = vmatprep.mubr.bf16.mxu0 0
    %1766 = vmatmul.mubr.bf16.gmra.mxu0 %v1618
    %v1767 = vpop.f32.mrf.mxu0
    %v1768 = vadd.f32 0.0, %v1767
    %v1769 = vpop.f32.mrf.mxu0
    %v1770 = vpop.f32.mrf.mxu0
    %v1771 = vadd.f32 0.0, %v1770
    %v1772 = vpop.f32.mrf.mxu0
    %1773 = vmatprep.mubr.bf16.mxu0 0
    %1774 = vmatmul.mubr.bf16.gmra.mxu0 %v1619
    %v1775 = vpop.f32.mrf.mxu0
    %v1776 = vadd.f32 0.0, %v1775
    %v1777 = vpop.f32.mrf.mxu0
    %v1778 = vpop.f32.mrf.mxu0
    %v1779 = vadd.f32 0.0, %v1778
    %v1780 = vpop.f32.mrf.mxu0
    %1781 = vdwg.mxu0
    %v1782 = vpack.c.bf16 %v1723, %v1720
    %v1783 = vpack.c.bf16 %v1731, %v1728
    %v1784 = vpack.c.bf16 %v1739, %v1736
    %v1785 = vpack.c.bf16 %v1747, %v1744
    %v1786 = vpack.c.bf16 %v1755, %v1752
    %v1787 = vpack.c.bf16 %v1763, %v1760
    %v1788 = vpack.c.bf16 %v1771, %v1768
    %v1789 = vpack.c.bf16 %v1779, %v1776
    %v1798 = vunpack.c.l.b16 %v1782
    %v1799 = vunpack.c.h.b16 %v1782
    %v1800 = vunpack.c.l.b16 %v1783
    %v1801 = vunpack.c.h.b16 %v1783
    %v1802 = vunpack.c.l.b16 %v1784
    %v1803 = vunpack.c.h.b16 %v1784
    %v1804 = vunpack.c.l.b16 %v1785
    %v1805 = vunpack.c.h.b16 %v1785
    %v1806 = vunpack.c.l.b16 %v1786
    %v1807 = vunpack.c.h.b16 %v1786
    %v1808 = vunpack.c.l.b16 %v1787
    %v1809 = vunpack.c.h.b16 %v1787
    %v1810 = vunpack.c.l.b16 %v1788
    %v1811 = vunpack.c.h.b16 %v1788
    %v1812 = vunpack.c.l.b16 %v1789
    %v1813 = vunpack.c.h.b16 %v1789
    %v1814 = vpack.c.b16 %v1798, %v1798
    %v1815 = vpack.c.b16 %v1799, %v1799
    %v1816 = vpack.c.b16 %v1800, %v1800
    %v1817 = vpack.c.b16 %v1801, %v1801
    %v1818 = vpack.c.b16 %v1802, %v1802
    %v1819 = vpack.c.b16 %v1803, %v1803
    %v1820 = vpack.c.b16 %v1804, %v1804
    %v1821 = vpack.c.b16 %v1805, %v1805
    %v1822 = vpack.c.b16 %v1806, %v1806
    %v1823 = vpack.c.b16 %v1807, %v1807
    %v1824 = vpack.c.b16 %v1808, %v1808
    %v1825 = vpack.c.b16 %v1809, %v1809
    %v1826 = vpack.c.b16 %v1810, %v1810
    %v1827 = vpack.c.b16 %v1811, %v1811
    %v1828 = vpack.c.b16 %v1812, %v1812
    %v1829 = vpack.c.b16 %v1813, %v1813
    %1846 = vst [vmem:[#allocation2] sm:$0xf] %v1814
    %1847 = vst [vmem:[#allocation2 + $0x4] sm:$0xf] %v1815
    %1848 = vst [vmem:[#allocation2 + $0x8] sm:$0xf] %v1816
    %1849 = vst [vmem:[#allocation2 + $0xc] sm:$0xf] %v1817
    %1850 = vst [vmem:[#allocation2 + $0x10] sm:$0xf] %v1818
    %1851 = vst [vmem:[#allocation2 + $0x14] sm:$0xf] %v1819
    %1852 = vst [vmem:[#allocation2 + $0x18] sm:$0xf] %v1820
    %1853 = vst [vmem:[#allocation2 + $0x1c] sm:$0xf] %v1821
    %1854 = vst [vmem:[#allocation2 + $0x20] sm:$0xf] %v1822
    %1855 = vst [vmem:[#allocation2 + $0x24] sm:$0xf] %v1823
    %1856 = vst [vmem:[#allocation2 + $0x28] sm:$0xf] %v1824
    %1857 = vst [vmem:[#allocation2 + $0x2c] sm:$0xf] %v1825
    %1858 = vst [vmem:[#allocation2 + $0x30] sm:$0xf] %v1826
    %1859 = vst [vmem:[#allocation2 + $0x34] sm:$0xf] %v1827
    %1860 = vst [vmem:[#allocation2 + $0x38] sm:$0xf] %v1828
    %1861 = vst [vmem:[#allocation2 + $0x3c] sm:$0xf] %v1829
    %s1862 = scalar_lea.vmem [#allocation8], 256
    %v1863 = vld [vmem:[%s1862] sm:$0xf]
    %v1864 = vld [vmem:[%s1862 + $0x4] sm:$0xf]
    %v1865 = vld [vmem:[%s1862 + $0x8] sm:$0xf]
    %v1866 = vld [vmem:[%s1862 + $0xc] sm:$0xf]
    %v1867 = vld [vmem:[%s1862 + $0x10] sm:$0xf]
    %v1868 = vld [vmem:[%s1862 + $0x14] sm:$0xf]
    %v1869 = vld [vmem:[%s1862 + $0x18] sm:$0xf]
    %v1870 = vld [vmem:[%s1862 + $0x1c] sm:$0xf]
    %v1871 = vld [vmem:[%s1862 + $0x20] sm:$0xf]
    %v1872 = vld [vmem:[%s1862 + $0x24] sm:$0xf]
    %v1873 = vld [vmem:[%s1862 + $0x28] sm:$0xf]
    %v1874 = vld [vmem:[%s1862 + $0x2c] sm:$0xf]
    %v1875 = vld [vmem:[%s1862 + $0x30] sm:$0xf]
    %v1876 = vld [vmem:[%s1862 + $0x34] sm:$0xf]
    %v1877 = vld [vmem:[%s1862 + $0x38] sm:$0xf]
    %v1878 = vld [vmem:[%s1862 + $0x3c] sm:$0xf]
    %v1895 = vunpack.c.l.b16 %v1863
    %v1896 = vunpack.c.l.b16 %v1864
    %v1897 = vunpack.c.l.b16 %v1865
    %v1898 = vunpack.c.l.b16 %v1866
    %v1899 = vunpack.c.l.b16 %v1867
    %v1900 = vunpack.c.l.b16 %v1868
    %v1901 = vunpack.c.l.b16 %v1869
    %v1902 = vunpack.c.l.b16 %v1870
    %v1903 = vunpack.c.l.b16 %v1871
    %v1904 = vunpack.c.l.b16 %v1872
    %v1905 = vunpack.c.l.b16 %v1873
    %v1906 = vunpack.c.l.b16 %v1874
    %v1907 = vunpack.c.l.b16 %v1875
    %v1908 = vunpack.c.l.b16 %v1876
    %v1909 = vunpack.c.l.b16 %v1877
    %v1910 = vunpack.c.l.b16 %v1878
    %v1911 = vpack.c.b16 %v1896, %v1895
    %v1912 = vpack.c.b16 %v1898, %v1897
    %v1913 = vpack.c.b16 %v1900, %v1899
    %v1914 = vpack.c.b16 %v1902, %v1901
    %v1915 = vpack.c.b16 %v1904, %v1903
    %v1916 = vpack.c.b16 %v1906, %v1905
    %v1917 = vpack.c.b16 %v1908, %v1907
    %v1918 = vpack.c.b16 %v1910, %v1909
    %1927 = vmatprep.subr.bf16.mxu0 0
    %1928 = vmatpush1.bf16.msra.mxu0 %v1918
    %1929 = vmatprep.subr.bf16.mxu0 0
    %1930 = vmatpush1.bf16.msra.mxu0 %v1917
    %1931 = vmatprep.subr.bf16.mxu0 0
    %1932 = vmatpush1.bf16.msra.mxu0 %v1916
    %1933 = vmatprep.subr.bf16.mxu0 0
    %1934 = vmatpush1.bf16.msra.mxu0 %v1915
    %1935 = vmatprep.subr.bf16.mxu0 0
    %1936 = vmatpush1.bf16.msra.mxu0 %v1914
    %1937 = vmatprep.subr.bf16.mxu0 0
    %1938 = vmatpush1.bf16.msra.mxu0 %v1913
    %1939 = vmatprep.subr.bf16.mxu0 0
    %1940 = vmatpush1.bf16.msra.mxu0 %v1912
    %1941 = vmatprep.subr.bf16.mxu0 0
    %1942 = vmatpush1.bf16.msra.mxu0 %v1911
    %1943 = vmatprep.subr.bf16.mxu0 0
    %1944 = vmatpush2.bf16.msra.mxu0 0
    %1945 = vmatprep.subr.bf16.mxu0 0
    %1946 = vmatpush2.bf16.msra.mxu0 0
    %1947 = vmatprep.subr.bf16.mxu0 0
    %1948 = vmatpush2.bf16.msra.mxu0 0
    %1949 = vmatprep.subr.bf16.mxu0 0
    %1950 = vmatpush2.bf16.msra.mxu0 0
    %1951 = vmatprep.subr.bf16.mxu0 0
    %1952 = vmatpush2.bf16.msra.mxu0 0
    %1953 = vmatprep.subr.bf16.mxu0 0
    %1954 = vmatpush2.bf16.msra.mxu0 0
    %1955 = vmatprep.subr.bf16.mxu0 0
    %1956 = vmatpush2.bf16.msra.mxu0 0
    %1957 = vmatprep.subr.bf16.mxu0 0
    %1958 = vmatpush2.bf16.msra.mxu0 0
    %1959 = vmatprep.mubr.bf16.mxu0 0
    %1960 = vmatmul.mubr.bf16.gmra.mxu0 %v1612
    %v1961 = vpop.f32.mrf.mxu0
    %v1962 = vadd.f32 0.0, %v1961
    %v1963 = vpop.f32.mrf.mxu0
    %v1964 = vpop.f32.mrf.mxu0
    %v1965 = vadd.f32 0.0, %v1964
    %v1966 = vpop.f32.mrf.mxu0
    %1967 = vmatprep.mubr.bf16.mxu0 0
    %1968 = vmatmul.mubr.bf16.gmra.mxu0 %v1613
    %v1969 = vpop.f32.mrf.mxu0
    %v1970 = vadd.f32 0.0, %v1969
    %v1971 = vpop.f32.mrf.mxu0
    %v1972 = vpop.f32.mrf.mxu0
    %v1973 = vadd.f32 0.0, %v1972
    %v1974 = vpop.f32.mrf.mxu0
    %1975 = vmatprep.mubr.bf16.mxu0 0
    %1976 = vmatmul.mubr.bf16.gmra.mxu0 %v1614
    %v1977 = vpop.f32.mrf.mxu0
    %v1978 = vadd.f32 0.0, %v1977
    %v1979 = vpop.f32.mrf.mxu0
    %v1980 = vpop.f32.mrf.mxu0
    %v1981 = vadd.f32 0.0, %v1980
    %v1982 = vpop.f32.mrf.mxu0
    %1983 = vmatprep.mubr.bf16.mxu0 0
    %1984 = vmatmul.mubr.bf16.gmra.mxu0 %v1615
    %v1985 = vpop.f32.mrf.mxu0
    %v1986 = vadd.f32 0.0, %v1985
    %v1987 = vpop.f32.mrf.mxu0
    %v1988 = vpop.f32.mrf.mxu0
    %v1989 = vadd.f32 0.0, %v1988
    %v1990 = vpop.f32.mrf.mxu0
    %1991 = vmatprep.mubr.bf16.mxu0 0
    %1992 = vmatmul.mubr.bf16.gmra.mxu0 %v1616
    %v1993 = vpop.f32.mrf.mxu0
    %v1994 = vadd.f32 0.0, %v1993
    %v1995 = vpop.f32.mrf.mxu0
    %v1996 = vpop.f32.mrf.mxu0
    %v1997 = vadd.f32 0.0, %v1996
    %v1998 = vpop.f32.mrf.mxu0
    %1999 = vmatprep.mubr.bf16.mxu0 0
    %2000 = vmatmul.mubr.bf16.gmra.mxu0 %v1617
    %v2001 = vpop.f32.mrf.mxu0
    %v2002 = vadd.f32 0.0, %v2001
    %v2003 = vpop.f32.mrf.mxu0
    %v2004 = vpop.f32.mrf.mxu0
    %v2005 = vadd.f32 0.0, %v2004
    %v2006 = vpop.f32.mrf.mxu0
    %2007 = vmatprep.mubr.bf16.mxu0 0
    %2008 = vmatmul.mubr.bf16.gmra.mxu0 %v1618
    %v2009 = vpop.f32.mrf.mxu0
    %v2010 = vadd.f32 0.0, %v2009
    %v2011 = vpop.f32.mrf.mxu0
    %v2012 = vpop.f32.mrf.mxu0
    %v2013 = vadd.f32 0.0, %v2012
    %v2014 = vpop.f32.mrf.mxu0
    %2015 = vmatprep.mubr.bf16.mxu0 0
    %2016 = vmatmul.mubr.bf16.gmra.mxu0 %v1619
    %v2017 = vpop.f32.mrf.mxu0
    %v2018 = vadd.f32 0.0, %v2017
    %v2019 = vpop.f32.mrf.mxu0
    %v2020 = vpop.f32.mrf.mxu0
    %v2021 = vadd.f32 0.0, %v2020
    %v2022 = vpop.f32.mrf.mxu0
    %2023 = vdwg.mxu0
    %v2024 = vpack.c.bf16 %v1965, %v1962
    %v2025 = vpack.c.bf16 %v1973, %v1970
    %v2026 = vpack.c.bf16 %v1981, %v1978
    %v2027 = vpack.c.bf16 %v1989, %v1986
    %v2028 = vpack.c.bf16 %v1997, %v1994
    %v2029 = vpack.c.bf16 %v2005, %v2002
    %v2030 = vpack.c.bf16 %v2013, %v2010
    %v2031 = vpack.c.bf16 %v2021, %v2018
    %v2040 = vunpack.c.l.b16 %v2024
    %v2041 = vunpack.c.h.b16 %v2024
    %v2042 = vunpack.c.l.b16 %v2025
    %v2043 = vunpack.c.h.b16 %v2025
    %v2044 = vunpack.c.l.b16 %v2026
    %v2045 = vunpack.c.h.b16 %v2026
    %v2046 = vunpack.c.l.b16 %v2027
    %v2047 = vunpack.c.h.b16 %v2027
    %v2048 = vunpack.c.l.b16 %v2028
    %v2049 = vunpack.c.h.b16 %v2028
    %v2050 = vunpack.c.l.b16 %v2029
    %v2051 = vunpack.c.h.b16 %v2029
    %v2052 = vunpack.c.l.b16 %v2030
    %v2053 = vunpack.c.h.b16 %v2030
    %v2054 = vunpack.c.l.b16 %v2031
    %v2055 = vunpack.c.h.b16 %v2031
    %v2056 = vpack.c.b16 %v2040, %v2040
    %v2057 = vpack.c.b16 %v2041, %v2041
    %v2058 = vpack.c.b16 %v2042, %v2042
    %v2059 = vpack.c.b16 %v2043, %v2043
    %v2060 = vpack.c.b16 %v2044, %v2044
    %v2061 = vpack.c.b16 %v2045, %v2045
    %v2062 = vpack.c.b16 %v2046, %v2046
    %v2063 = vpack.c.b16 %v2047, %v2047
    %v2064 = vpack.c.b16 %v2048, %v2048
    %v2065 = vpack.c.b16 %v2049, %v2049
    %v2066 = vpack.c.b16 %v2050, %v2050
    %v2067 = vpack.c.b16 %v2051, %v2051
    %v2068 = vpack.c.b16 %v2052, %v2052
    %v2069 = vpack.c.b16 %v2053, %v2053
    %v2070 = vpack.c.b16 %v2054, %v2054
    %v2071 = vpack.c.b16 %v2055, %v2055
    %2088 = vst [vmem:[#allocation2 + $0x40] sm:$0xf] %v2056
    %2089 = vst [vmem:[#allocation2 + $0x44] sm:$0xf] %v2057
    %2090 = vst [vmem:[#allocation2 + $0x48] sm:$0xf] %v2058
    %2091 = vst [vmem:[#allocation2 + $0x4c] sm:$0xf] %v2059
    %2092 = vst [vmem:[#allocation2 + $0x50] sm:$0xf] %v2060
    %2093 = vst [vmem:[#allocation2 + $0x54] sm:$0xf] %v2061
    %2094 = vst [vmem:[#allocation2 + $0x58] sm:$0xf] %v2062
    %2095 = vst [vmem:[#allocation2 + $0x5c] sm:$0xf] %v2063
    %2096 = vst [vmem:[#allocation2 + $0x60] sm:$0xf] %v2064
    %2097 = vst [vmem:[#allocation2 + $0x64] sm:$0xf] %v2065
    %2098 = vst [vmem:[#allocation2 + $0x68] sm:$0xf] %v2066
    %2099 = vst [vmem:[#allocation2 + $0x6c] sm:$0xf] %v2067
    %2100 = vst [vmem:[#allocation2 + $0x70] sm:$0xf] %v2068
    %2101 = vst [vmem:[#allocation2 + $0x74] sm:$0xf] %v2069
    %2102 = vst [vmem:[#allocation2 + $0x78] sm:$0xf] %v2070
    %2103 = vst [vmem:[#allocation2 + $0x7c] sm:$0xf] %v2071
    %s2104 = scalar_lea.vmem [#allocation8], 320
    %v2105 = vld [vmem:[%s2104] sm:$0xf]
    %v2106 = vld [vmem:[%s2104 + $0x4] sm:$0xf]
    %v2107 = vld [vmem:[%s2104 + $0x8] sm:$0xf]
    %v2108 = vld [vmem:[%s2104 + $0xc] sm:$0xf]
    %v2109 = vld [vmem:[%s2104 + $0x10] sm:$0xf]
    %v2110 = vld [vmem:[%s2104 + $0x14] sm:$0xf]
    %v2111 = vld [vmem:[%s2104 + $0x18] sm:$0xf]
    %v2112 = vld [vmem:[%s2104 + $0x1c] sm:$0xf]
    %v2113 = vld [vmem:[%s2104 + $0x20] sm:$0xf]
    %v2114 = vld [vmem:[%s2104 + $0x24] sm:$0xf]
    %v2115 = vld [vmem:[%s2104 + $0x28] sm:$0xf]
    %v2116 = vld [vmem:[%s2104 + $0x2c] sm:$0xf]
    %v2117 = vld [vmem:[%s2104 + $0x30] sm:$0xf]
    %v2118 = vld [vmem:[%s2104 + $0x34] sm:$0xf]
    %v2119 = vld [vmem:[%s2104 + $0x38] sm:$0xf]
    %v2120 = vld [vmem:[%s2104 + $0x3c] sm:$0xf]
    %v2137 = vunpack.c.l.b16 %v2105
    %v2138 = vunpack.c.l.b16 %v2106
    %v2139 = vunpack.c.l.b16 %v2107
    %v2140 = vunpack.c.l.b16 %v2108
    %v2141 = vunpack.c.l.b16 %v2109
    %v2142 = vunpack.c.l.b16 %v2110
    %v2143 = vunpack.c.l.b16 %v2111
    %v2144 = vunpack.c.l.b16 %v2112
    %v2145 = vunpack.c.l.b16 %v2113
    %v2146 = vunpack.c.l.b16 %v2114
    %v2147 = vunpack.c.l.b16 %v2115
    %v2148 = vunpack.c.l.b16 %v2116
    %v2149 = vunpack.c.l.b16 %v2117
    %v2150 = vunpack.c.l.b16 %v2118
    %v2151 = vunpack.c.l.b16 %v2119
    %v2152 = vunpack.c.l.b16 %v2120
    %v2153 = vpack.c.b16 %v2138, %v2137
    %v2154 = vpack.c.b16 %v2140, %v2139
    %v2155 = vpack.c.b16 %v2142, %v2141
    %v2156 = vpack.c.b16 %v2144, %v2143
    %v2157 = vpack.c.b16 %v2146, %v2145
    %v2158 = vpack.c.b16 %v2148, %v2147
    %v2159 = vpack.c.b16 %v2150, %v2149
    %v2160 = vpack.c.b16 %v2152, %v2151
    %2169 = vmatprep.subr.bf16.mxu0 0
    %2170 = vmatpush1.bf16.msra.mxu0 %v2160
    %2171 = vmatprep.subr.bf16.mxu0 0
    %2172 = vmatpush1.bf16.msra.mxu0 %v2159
    %2173 = vmatprep.subr.bf16.mxu0 0
    %2174 = vmatpush1.bf16.msra.mxu0 %v2158
    %2175 = vmatprep.subr.bf16.mxu0 0
    %2176 = vmatpush1.bf16.msra.mxu0 %v2157
    %2177 = vmatprep.subr.bf16.mxu0 0
    %2178 = vmatpush1.bf16.msra.mxu0 %v2156
    %2179 = vmatprep.subr.bf16.mxu0 0
    %2180 = vmatpush1.bf16.msra.mxu0 %v2155
    %2181 = vmatprep.subr.bf16.mxu0 0
    %2182 = vmatpush1.bf16.msra.mxu0 %v2154
    %2183 = vmatprep.subr.bf16.mxu0 0
    %2184 = vmatpush1.bf16.msra.mxu0 %v2153
    %2185 = vmatprep.subr.bf16.mxu0 0
    %2186 = vmatpush2.bf16.msra.mxu0 0
    %2187 = vmatprep.subr.bf16.mxu0 0
    %2188 = vmatpush2.bf16.msra.mxu0 0
    %2189 = vmatprep.subr.bf16.mxu0 0
    %2190 = vmatpush2.bf16.msra.mxu0 0
    %2191 = vmatprep.subr.bf16.mxu0 0
    %2192 = vmatpush2.bf16.msra.mxu0 0
    %2193 = vmatprep.subr.bf16.mxu0 0
    %2194 = vmatpush2.bf16.msra.mxu0 0
    %2195 = vmatprep.subr.bf16.mxu0 0
    %2196 = vmatpush2.bf16.msra.mxu0 0
    %2197 = vmatprep.subr.bf16.mxu0 0
    %2198 = vmatpush2.bf16.msra.mxu0 0
    %2199 = vmatprep.subr.bf16.mxu0 0
    %2200 = vmatpush2.bf16.msra.mxu0 0
    %2201 = vmatprep.mubr.bf16.mxu0 0
    %2202 = vmatmul.mubr.bf16.gmra.mxu0 %v1612
    %v2203 = vpop.f32.mrf.mxu0
    %v2204 = vadd.f32 0.0, %v2203
    %v2205 = vpop.f32.mrf.mxu0
    %v2206 = vpop.f32.mrf.mxu0
    %v2207 = vadd.f32 0.0, %v2206
    %v2208 = vpop.f32.mrf.mxu0
    %2209 = vmatprep.mubr.bf16.mxu0 0
    %2210 = vmatmul.mubr.bf16.gmra.mxu0 %v1613
    %v2211 = vpop.f32.mrf.mxu0
    %v2212 = vadd.f32 0.0, %v2211
    %v2213 = vpop.f32.mrf.mxu0
    %v2214 = vpop.f32.mrf.mxu0
    %v2215 = vadd.f32 0.0, %v2214
    %v2216 = vpop.f32.mrf.mxu0
    %2217 = vmatprep.mubr.bf16.mxu0 0
    %2218 = vmatmul.mubr.bf16.gmra.mxu0 %v1614
    %v2219 = vpop.f32.mrf.mxu0
    %v2220 = vadd.f32 0.0, %v2219
    %v2221 = vpop.f32.mrf.mxu0
    %v2222 = vpop.f32.mrf.mxu0
    %v2223 = vadd.f32 0.0, %v2222
    %v2224 = vpop.f32.mrf.mxu0
    %2225 = vmatprep.mubr.bf16.mxu0 0
    %2226 = vmatmul.mubr.bf16.gmra.mxu0 %v1615
    %v2227 = vpop.f32.mrf.mxu0
    %v2228 = vadd.f32 0.0, %v2227
    %v2229 = vpop.f32.mrf.mxu0
    %v2230 = vpop.f32.mrf.mxu0
    %v2231 = vadd.f32 0.0, %v2230
    %v2232 = vpop.f32.mrf.mxu0
    %2233 = vmatprep.mubr.bf16.mxu0 0
    %2234 = vmatmul.mubr.bf16.gmra.mxu0 %v1616
    %v2235 = vpop.f32.mrf.mxu0
    %v2236 = vadd.f32 0.0, %v2235
    %v2237 = vpop.f32.mrf.mxu0
    %v2238 = vpop.f32.mrf.mxu0
    %v2239 = vadd.f32 0.0, %v2238
    %v2240 = vpop.f32.mrf.mxu0
    %2241 = vmatprep.mubr.bf16.mxu0 0
    %2242 = vmatmul.mubr.bf16.gmra.mxu0 %v1617
    %v2243 = vpop.f32.mrf.mxu0
    %v2244 = vadd.f32 0.0, %v2243
    %v2245 = vpop.f32.mrf.mxu0
    %v2246 = vpop.f32.mrf.mxu0
    %v2247 = vadd.f32 0.0, %v2246
    %v2248 = vpop.f32.mrf.mxu0
    %2249 = vmatprep.mubr.bf16.mxu0 0
    %2250 = vmatmul.mubr.bf16.gmra.mxu0 %v1618
    %v2251 = vpop.f32.mrf.mxu0
    %v2252 = vadd.f32 0.0, %v2251
    %v2253 = vpop.f32.mrf.mxu0
    %v2254 = vpop.f32.mrf.mxu0
    %v2255 = vadd.f32 0.0, %v2254
    %v2256 = vpop.f32.mrf.mxu0
    %2257 = vmatprep.mubr.bf16.mxu0 0
    %2258 = vmatmul.mubr.bf16.gmra.mxu0 %v1619
    %v2259 = vpop.f32.mrf.mxu0
    %v2260 = vadd.f32 0.0, %v2259
    %v2261 = vpop.f32.mrf.mxu0
    %v2262 = vpop.f32.mrf.mxu0
    %v2263 = vadd.f32 0.0, %v2262
    %v2264 = vpop.f32.mrf.mxu0
    %2265 = vdwg.mxu0
    %v2266 = vpack.c.bf16 %v2207, %v2204
    %v2267 = vpack.c.bf16 %v2215, %v2212
    %v2268 = vpack.c.bf16 %v2223, %v2220
    %v2269 = vpack.c.bf16 %v2231, %v2228
    %v2270 = vpack.c.bf16 %v2239, %v2236
    %v2271 = vpack.c.bf16 %v2247, %v2244
    %v2272 = vpack.c.bf16 %v2255, %v2252
    %v2273 = vpack.c.bf16 %v2263, %v2260
    %v2282 = vunpack.c.l.b16 %v2266
    %v2283 = vunpack.c.h.b16 %v2266
    %v2284 = vunpack.c.l.b16 %v2267
    %v2285 = vunpack.c.h.b16 %v2267
    %v2286 = vunpack.c.l.b16 %v2268
    %v2287 = vunpack.c.h.b16 %v2268
    %v2288 = vunpack.c.l.b16 %v2269
    %v2289 = vunpack.c.h.b16 %v2269
    %v2290 = vunpack.c.l.b16 %v2270
    %v2291 = vunpack.c.h.b16 %v2270
    %v2292 = vunpack.c.l.b16 %v2271
    %v2293 = vunpack.c.h.b16 %v2271
    %v2294 = vunpack.c.l.b16 %v2272
    %v2295 = vunpack.c.h.b16 %v2272
    %v2296 = vunpack.c.l.b16 %v2273
    %v2297 = vunpack.c.h.b16 %v2273
    %v2298 = vpack.c.b16 %v2282, %v2282
    %v2299 = vpack.c.b16 %v2283, %v2283
    %v2300 = vpack.c.b16 %v2284, %v2284
    %v2301 = vpack.c.b16 %v2285, %v2285
    %v2302 = vpack.c.b16 %v2286, %v2286
    %v2303 = vpack.c.b16 %v2287, %v2287
    %v2304 = vpack.c.b16 %v2288, %v2288
    %v2305 = vpack.c.b16 %v2289, %v2289
    %v2306 = vpack.c.b16 %v2290, %v2290
    %v2307 = vpack.c.b16 %v2291, %v2291
    %v2308 = vpack.c.b16 %v2292, %v2292
    %v2309 = vpack.c.b16 %v2293, %v2293
    %v2310 = vpack.c.b16 %v2294, %v2294
    %v2311 = vpack.c.b16 %v2295, %v2295
    %v2312 = vpack.c.b16 %v2296, %v2296
    %v2313 = vpack.c.b16 %v2297, %v2297
    %2330 = vst [vmem:[#allocation2 + $0x80] sm:$0xf] %v2298
    %2331 = vst [vmem:[#allocation2 + $0x84] sm:$0xf] %v2299
    %2332 = vst [vmem:[#allocation2 + $0x88] sm:$0xf] %v2300
    %2333 = vst [vmem:[#allocation2 + $0x8c] sm:$0xf] %v2301
    %2334 = vst [vmem:[#allocation2 + $0x90] sm:$0xf] %v2302
    %2335 = vst [vmem:[#allocation2 + $0x94] sm:$0xf] %v2303
    %2336 = vst [vmem:[#allocation2 + $0x98] sm:$0xf] %v2304
    %2337 = vst [vmem:[#allocation2 + $0x9c] sm:$0xf] %v2305
    %2338 = vst [vmem:[#allocation2 + $0xa0] sm:$0xf] %v2306
    %2339 = vst [vmem:[#allocation2 + $0xa4] sm:$0xf] %v2307
    %2340 = vst [vmem:[#allocation2 + $0xa8] sm:$0xf] %v2308
    %2341 = vst [vmem:[#allocation2 + $0xac] sm:$0xf] %v2309
    %2342 = vst [vmem:[#allocation2 + $0xb0] sm:$0xf] %v2310
    %2343 = vst [vmem:[#allocation2 + $0xb4] sm:$0xf] %v2311
    %2344 = vst [vmem:[#allocation2 + $0xb8] sm:$0xf] %v2312
    %2345 = vst [vmem:[#allocation2 + $0xbc] sm:$0xf] %v2313
    %v2346 = vld [vmem:[#allocation6] sm:$0xff]
    %v2347 = vld [vmem:[#allocation6 + $0x8] sm:$0xf]
    %v2348 = vld [vmem:[#allocation6 + $0xc] sm:$0xff]
    %v2349 = vld [vmem:[#allocation6 + $0x14] sm:$0xf]
    %v2350 = vld [vmem:[#allocation6 + $0x18] sm:$0xff]
    %v2351 = vld [vmem:[#allocation6 + $0x20] sm:$0xf]
    %v2352 = vld [vmem:[#allocation6 + $0x24] sm:$0xff]
    %v2353 = vld [vmem:[#allocation6 + $0x2c] sm:$0xf]
    %v2354 = vld [vmem:[#allocation6 + $0x30] sm:$0xff]
    %v2355 = vld [vmem:[#allocation6 + $0x38] sm:$0xf]
    %v2356 = vld [vmem:[#allocation6 + $0x3c] sm:$0xff]
    %v2357 = vld [vmem:[#allocation6 + $0x44] sm:$0xf]
    %v2358 = vld [vmem:[#allocation6 + $0x48] sm:$0xff]
    %v2359 = vld [vmem:[#allocation6 + $0x50] sm:$0xf]
    %v2360 = vld [vmem:[#allocation6 + $0x54] sm:$0xff]
    %v2361 = vld [vmem:[#allocation6 + $0x5c] sm:$0xf]
    %v2362 = vld [vmem:[#allocation6 + $0x60] sm:$0xff]
    %v2363 = vld [vmem:[#allocation6 + $0x68] sm:$0xf]
    %v2364 = vld [vmem:[#allocation6 + $0x6c] sm:$0xff]
    %v2365 = vld [vmem:[#allocation6 + $0x74] sm:$0xf]
    %v2366 = vld [vmem:[#allocation6 + $0x78] sm:$0xff]
    %v2367 = vld [vmem:[#allocation6 + $0x80] sm:$0xf]
    %v2368 = vld [vmem:[#allocation6 + $0x84] sm:$0xff]
    %v2369 = vld [vmem:[#allocation6 + $0x8c] sm:$0xf]
    %v2370 = vld [vmem:[#allocation6 + $0x90] sm:$0xff]
    %v2371 = vld [vmem:[#allocation6 + $0x98] sm:$0xf]
    %v2372 = vld [vmem:[#allocation6 + $0x9c] sm:$0xff]
    %v2373 = vld [vmem:[#allocation6 + $0xa4] sm:$0xf]
    %v2374 = vld [vmem:[#allocation6 + $0xa8] sm:$0xff]
    %v2375 = vld [vmem:[#allocation6 + $0xb0] sm:$0xf]
    %v2376 = vld [vmem:[#allocation6 + $0xb4] sm:$0xff]
    %v2377 = vld [vmem:[#allocation6 + $0xbc] sm:$0xf]
    %v2378 = vld [vmem:[#allocation2] sm:$0xf]
    %v2379 = vld [vmem:[#allocation2 + $0x4] sm:$0xf]
    %v2380 = vld [vmem:[#allocation2 + $0x8] sm:$0xf]
    %v2381 = vld [vmem:[#allocation2 + $0xc] sm:$0xf]
    %v2382 = vld [vmem:[#allocation2 + $0x10] sm:$0xf]
    %v2383 = vld [vmem:[#allocation2 + $0x14] sm:$0xf]
    %v2384 = vld [vmem:[#allocation2 + $0x18] sm:$0xf]
    %v2385 = vld [vmem:[#allocation2 + $0x1c] sm:$0xf]
    %v2386 = vld [vmem:[#allocation2 + $0x20] sm:$0xf]
    %v2387 = vld [vmem:[#allocation2 + $0x24] sm:$0xf]
    %v2388 = vld [vmem:[#allocation2 + $0x28] sm:$0xf]
    %v2389 = vld [vmem:[#allocation2 + $0x2c] sm:$0xf]
    %v2390 = vld [vmem:[#allocation2 + $0x30] sm:$0xf]
    %v2391 = vld [vmem:[#allocation2 + $0x34] sm:$0xf]
    %v2392 = vld [vmem:[#allocation2 + $0x38] sm:$0xf]
    %v2393 = vld [vmem:[#allocation2 + $0x3c] sm:$0xf]
    %v2394 = vld [vmem:[#allocation2 + $0x40] sm:$0xf]
    %v2395 = vld [vmem:[#allocation2 + $0x44] sm:$0xf]
    %v2396 = vld [vmem:[#allocation2 + $0x48] sm:$0xf]
    %v2397 = vld [vmem:[#allocation2 + $0x4c] sm:$0xf]
    %v2398 = vld [vmem:[#allocation2 + $0x50] sm:$0xf]
    %v2399 = vld [vmem:[#allocation2 + $0x54] sm:$0xf]
    %v2400 = vld [vmem:[#allocation2 + $0x58] sm:$0xf]
    %v2401 = vld [vmem:[#allocation2 + $0x5c] sm:$0xf]
    %v2402 = vld [vmem:[#allocation2 + $0x60] sm:$0xf]
    %v2403 = vld [vmem:[#allocation2 + $0x64] sm:$0xf]
    %v2404 = vld [vmem:[#allocation2 + $0x68] sm:$0xf]
    %v2405 = vld [vmem:[#allocation2 + $0x6c] sm:$0xf]
    %v2406 = vld [vmem:[#allocation2 + $0x70] sm:$0xf]
    %v2407 = vld [vmem:[#allocation2 + $0x74] sm:$0xf]
    %v2408 = vld [vmem:[#allocation2 + $0x78] sm:$0xf]
    %v2409 = vld [vmem:[#allocation2 + $0x7c] sm:$0xf]
    %v2410 = vld [vmem:[#allocation2 + $0x80] sm:$0xf]
    %v2411 = vld [vmem:[#allocation2 + $0x84] sm:$0xf]
    %v2412 = vld [vmem:[#allocation2 + $0x88] sm:$0xf]
    %v2413 = vld [vmem:[#allocation2 + $0x8c] sm:$0xf]
    %v2414 = vld [vmem:[#allocation2 + $0x90] sm:$0xf]
    %v2415 = vld [vmem:[#allocation2 + $0x94] sm:$0xf]
    %v2416 = vld [vmem:[#allocation2 + $0x98] sm:$0xf]
    %v2417 = vld [vmem:[#allocation2 + $0x9c] sm:$0xf]
    %v2418 = vld [vmem:[#allocation2 + $0xa0] sm:$0xf]
    %v2419 = vld [vmem:[#allocation2 + $0xa4] sm:$0xf]
    %v2420 = vld [vmem:[#allocation2 + $0xa8] sm:$0xf]
    %v2421 = vld [vmem:[#allocation2 + $0xac] sm:$0xf]
    %v2422 = vld [vmem:[#allocation2 + $0xb0] sm:$0xf]
    %v2423 = vld [vmem:[#allocation2 + $0xb4] sm:$0xf]
    %v2424 = vld [vmem:[#allocation2 + $0xb8] sm:$0xf]
    %v2425 = vld [vmem:[#allocation2 + $0xbc] sm:$0xf]
    %s2426 = scalar_lea.vmem [#allocation9], 64
    %v2427 = vld [vmem:[%s2426] sm:$0xf]
    %v2428 = vld [vmem:[%s2426 + $0x4] sm:$0xf]
    %v2429 = vld [vmem:[%s2426 + $0x8] sm:$0xf]
    %v2430 = vld [vmem:[%s2426 + $0xc] sm:$0xf]
    %v2431 = vld [vmem:[%s2426 + $0x10] sm:$0xf]
    %v2432 = vld [vmem:[%s2426 + $0x14] sm:$0xf]
    %v2433 = vld [vmem:[%s2426 + $0x18] sm:$0xf]
    %v2434 = vld [vmem:[%s2426 + $0x1c] sm:$0xf]
    %v2435 = vld [vmem:[%s2426 + $0x20] sm:$0xf]
    %v2436 = vld [vmem:[%s2426 + $0x24] sm:$0xf]
    %v2437 = vld [vmem:[%s2426 + $0x28] sm:$0xf]
    %v2438 = vld [vmem:[%s2426 + $0x2c] sm:$0xf]
    %v2439 = vld [vmem:[%s2426 + $0x30] sm:$0xf]
    %v2440 = vld [vmem:[%s2426 + $0x34] sm:$0xf]
    %v2441 = vld [vmem:[%s2426 + $0x38] sm:$0xf]
    %v2442 = vld [vmem:[%s2426 + $0x3c] sm:$0xf]
    %v2459 = vunpack.c.l.b16 %v2427
    %v2460 = vunpack.c.l.b16 %v2428
    %v2461 = vunpack.c.l.b16 %v2429
    %v2462 = vunpack.c.l.b16 %v2430
    %v2463 = vunpack.c.l.b16 %v2431
    %v2464 = vunpack.c.l.b16 %v2432
    %v2465 = vunpack.c.l.b16 %v2433
    %v2466 = vunpack.c.l.b16 %v2434
    %v2467 = vunpack.c.l.b16 %v2435
    %v2468 = vunpack.c.l.b16 %v2436
    %v2469 = vunpack.c.l.b16 %v2437
    %v2470 = vunpack.c.l.b16 %v2438
    %v2471 = vunpack.c.l.b16 %v2439
    %v2472 = vunpack.c.l.b16 %v2440
    %v2473 = vunpack.c.l.b16 %v2441
    %v2474 = vunpack.c.l.b16 %v2442
    %v2475 = vpack.c.b16 %v2460, %v2459
    %v2476 = vpack.c.b16 %v2462, %v2461
    %v2477 = vpack.c.b16 %v2464, %v2463
    %v2478 = vpack.c.b16 %v2466, %v2465
    %v2479 = vpack.c.b16 %v2468, %v2467
    %v2480 = vpack.c.b16 %v2470, %v2469
    %v2481 = vpack.c.b16 %v2472, %v2471
    %v2482 = vpack.c.b16 %v2474, %v2473
    %2491 = vmatprep.subr.bf16.mxu0 0
    %2492 = vmatpush1.bf16.msra.mxu0 %v2482
    %2493 = vmatprep.subr.bf16.mxu0 0
    %2494 = vmatpush1.bf16.msra.mxu0 %v2481
    %2495 = vmatprep.subr.bf16.mxu0 0
    %2496 = vmatpush1.bf16.msra.mxu0 %v2480
    %2497 = vmatprep.subr.bf16.mxu0 0
    %2498 = vmatpush1.bf16.msra.mxu0 %v2479
    %2499 = vmatprep.subr.bf16.mxu0 0
    %2500 = vmatpush1.bf16.msra.mxu0 %v2478
    %2501 = vmatprep.subr.bf16.mxu0 0
    %2502 = vmatpush1.bf16.msra.mxu0 %v2477
    %2503 = vmatprep.subr.bf16.mxu0 0
    %2504 = vmatpush1.bf16.msra.mxu0 %v2476
    %2505 = vmatprep.subr.bf16.mxu0 0
    %2506 = vmatpush1.bf16.msra.mxu0 %v2475
    %2507 = vmatprep.subr.bf16.mxu0 0
    %2508 = vmatpush2.bf16.msra.mxu0 0
    %2509 = vmatprep.subr.bf16.mxu0 0
    %2510 = vmatpush2.bf16.msra.mxu0 0
    %2511 = vmatprep.subr.bf16.mxu0 0
    %2512 = vmatpush2.bf16.msra.mxu0 0
    %2513 = vmatprep.subr.bf16.mxu0 0
    %2514 = vmatpush2.bf16.msra.mxu0 0
    %2515 = vmatprep.subr.bf16.mxu0 0
    %2516 = vmatpush2.bf16.msra.mxu0 0
    %2517 = vmatprep.subr.bf16.mxu0 0
    %2518 = vmatpush2.bf16.msra.mxu0 0
    %2519 = vmatprep.subr.bf16.mxu0 0
    %2520 = vmatpush2.bf16.msra.mxu0 0
    %2521 = vmatprep.subr.bf16.mxu0 0
    %2522 = vmatpush2.bf16.msra.mxu0 0
    %2523 = vmatprep.mubr.bf16.mxu0 0
    %2524 = vmatmul.mubr.bf16.gmra.mxu0 %v1612
    %v2525 = vpop.f32.mrf.mxu0
    %v2526 = vadd.f32 0.0, %v2525
    %v2527 = vpop.f32.mrf.mxu0
    %v2528 = vpop.f32.mrf.mxu0
    %v2529 = vadd.f32 0.0, %v2528
    %v2530 = vpop.f32.mrf.mxu0
    %2531 = vmatprep.mubr.bf16.mxu0 0
    %2532 = vmatmul.mubr.bf16.gmra.mxu0 %v1613
    %v2533 = vpop.f32.mrf.mxu0
    %v2534 = vadd.f32 0.0, %v2533
    %v2535 = vpop.f32.mrf.mxu0
    %v2536 = vpop.f32.mrf.mxu0
    %v2537 = vadd.f32 0.0, %v2536
    %v2538 = vpop.f32.mrf.mxu0
    %2539 = vmatprep.mubr.bf16.mxu0 0
    %2540 = vmatmul.mubr.bf16.gmra.mxu0 %v1614
    %v2541 = vpop.f32.mrf.mxu0
    %v2542 = vadd.f32 0.0, %v2541
    %v2543 = vpop.f32.mrf.mxu0
    %v2544 = vpop.f32.mrf.mxu0
    %v2545 = vadd.f32 0.0, %v2544
    %v2546 = vpop.f32.mrf.mxu0
    %2547 = vmatprep.mubr.bf16.mxu0 0
    %2548 = vmatmul.mubr.bf16.gmra.mxu0 %v1615
    %v2549 = vpop.f32.mrf.mxu0
    %v2550 = vadd.f32 0.0, %v2549
    %v2551 = vpop.f32.mrf.mxu0
    %v2552 = vpop.f32.mrf.mxu0
    %v2553 = vadd.f32 0.0, %v2552
    %v2554 = vpop.f32.mrf.mxu0
    %2555 = vmatprep.mubr.bf16.mxu0 0
    %2556 = vmatmul.mubr.bf16.gmra.mxu0 %v1616
    %v2557 = vpop.f32.mrf.mxu0
    %v2558 = vadd.f32 0.0, %v2557
    %v2559 = vpop.f32.mrf.mxu0
    %v2560 = vpop.f32.mrf.mxu0
    %v2561 = vadd.f32 0.0, %v2560
    %v2562 = vpop.f32.mrf.mxu0
    %2563 = vmatprep.mubr.bf16.mxu0 0
    %2564 = vmatmul.mubr.bf16.gmra.mxu0 %v1617
    %v2565 = vpop.f32.mrf.mxu0
    %v2566 = vadd.f32 0.0, %v2565
    %v2567 = vpop.f32.mrf.mxu0
    %v2568 = vpop.f32.mrf.mxu0
    %v2569 = vadd.f32 0.0, %v2568
    %v2570 = vpop.f32.mrf.mxu0
    %2571 = vmatprep.mubr.bf16.mxu0 0
    %2572 = vmatmul.mubr.bf16.gmra.mxu0 %v1618
    %v2573 = vpop.f32.mrf.mxu0
    %v2574 = vadd.f32 0.0, %v2573
    %v2575 = vpop.f32.mrf.mxu0
    %v2576 = vpop.f32.mrf.mxu0
    %v2577 = vadd.f32 0.0, %v2576
    %v2578 = vpop.f32.mrf.mxu0
    %2579 = vmatprep.mubr.bf16.mxu0 0
    %2580 = vmatmul.mubr.bf16.gmra.mxu0 %v1619
    %v2581 = vpop.f32.mrf.mxu0
    %v2582 = vadd.f32 0.0, %v2581
    %v2583 = vpop.f32.mrf.mxu0
    %v2584 = vpop.f32.mrf.mxu0
    %v2585 = vadd.f32 0.0, %v2584
    %v2586 = vpop.f32.mrf.mxu0
    %2587 = vdwg.mxu0
    %v2620 = vunpack.c.l.b16 %v2346
    %v2621 = vunpack.c.h.b16 %v2346
    %v2622 = vunpack.c.l.b16 %v2347
    %v2623 = vunpack.c.l.b16 %v2348
    %v2624 = vunpack.c.h.b16 %v2348
    %v2625 = vunpack.c.l.b16 %v2349
    %v2626 = vunpack.c.l.b16 %v2350
    %v2627 = vunpack.c.h.b16 %v2350
    %v2628 = vunpack.c.l.b16 %v2351
    %v2629 = vunpack.c.l.b16 %v2352
    %v2630 = vunpack.c.h.b16 %v2352
    %v2631 = vunpack.c.l.b16 %v2353
    %v2632 = vunpack.c.l.b16 %v2354
    %v2633 = vunpack.c.h.b16 %v2354
    %v2634 = vunpack.c.l.b16 %v2355
    %v2635 = vunpack.c.l.b16 %v2356
    %v2636 = vunpack.c.h.b16 %v2356
    %v2637 = vunpack.c.l.b16 %v2357
    %v2638 = vunpack.c.l.b16 %v2358
    %v2639 = vunpack.c.h.b16 %v2358
    %v2640 = vunpack.c.l.b16 %v2359
    %v2641 = vunpack.c.l.b16 %v2360
    %v2642 = vunpack.c.h.b16 %v2360
    %v2643 = vunpack.c.l.b16 %v2361
    %v2644 = vunpack.c.l.b16 %v2362
    %v2645 = vunpack.c.h.b16 %v2362
    %v2646 = vunpack.c.l.b16 %v2363
    %v2647 = vunpack.c.l.b16 %v2364
    %v2648 = vunpack.c.h.b16 %v2364
    %v2649 = vunpack.c.l.b16 %v2365
    %v2650 = vunpack.c.l.b16 %v2366
    %v2651 = vunpack.c.h.b16 %v2366
    %v2652 = vunpack.c.l.b16 %v2367
    %v2653 = vunpack.c.l.b16 %v2368
    %v2654 = vunpack.c.h.b16 %v2368
    %v2655 = vunpack.c.l.b16 %v2369
    %v2656 = vunpack.c.l.b16 %v2370
    %v2657 = vunpack.c.h.b16 %v2370
    %v2658 = vunpack.c.l.b16 %v2371
    %v2659 = vunpack.c.l.b16 %v2372
    %v2660 = vunpack.c.h.b16 %v2372
    %v2661 = vunpack.c.l.b16 %v2373
    %v2662 = vunpack.c.l.b16 %v2374
    %v2663 = vunpack.c.h.b16 %v2374
    %v2664 = vunpack.c.l.b16 %v2375
    %v2665 = vunpack.c.l.b16 %v2376
    %v2666 = vunpack.c.h.b16 %v2376
    %v2667 = vunpack.c.l.b16 %v2377
    %v2668 = vpack.c.b16 %v2623, %v2620
    %v2669 = vpack.c.b16 %v2624, %v2621
    %v2670 = vpack.c.b16 %v2625, %v2622
    %v2671 = vpack.c.b16 %v2629, %v2626
    %v2672 = vpack.c.b16 %v2630, %v2627
    %v2673 = vpack.c.b16 %v2631, %v2628
    %v2674 = vpack.c.b16 %v2635, %v2632
    %v2675 = vpack.c.b16 %v2636, %v2633
    %v2676 = vpack.c.b16 %v2637, %v2634
    %v2677 = vpack.c.b16 %v2641, %v2638
    %v2678 = vpack.c.b16 %v2642, %v2639
    %v2679 = vpack.c.b16 %v2643, %v2640
    %v2680 = vpack.c.b16 %v2647, %v2644
    %v2681 = vpack.c.b16 %v2648, %v2645
    %v2682 = vpack.c.b16 %v2649, %v2646
    %v2683 = vpack.c.b16 %v2653, %v2650
    %v2684 = vpack.c.b16 %v2654, %v2651
    %v2685 = vpack.c.b16 %v2655, %v2652
    %v2686 = vpack.c.b16 %v2659, %v2656
    %v2687 = vpack.c.b16 %v2660, %v2657
    %v2688 = vpack.c.b16 %v2661, %v2658
    %v2689 = vpack.c.b16 %v2665, %v2662
    %v2690 = vpack.c.b16 %v2666, %v2663
    %v2691 = vpack.c.b16 %v2667, %v2664
    %v2764 = vunpack.c.l.b16 %v2378
    %v2765 = vunpack.c.l.b16 %v2379
    %v2766 = vunpack.c.l.b16 %v2380
    %v2767 = vunpack.c.l.b16 %v2381
    %v2768 = vunpack.c.l.b16 %v2382
    %v2769 = vunpack.c.l.b16 %v2383
    %v2770 = vunpack.c.l.b16 %v2384
    %v2771 = vunpack.c.l.b16 %v2385
    %v2772 = vunpack.c.l.b16 %v2386
    %v2773 = vunpack.c.l.b16 %v2387
    %v2774 = vunpack.c.l.b16 %v2388
    %v2775 = vunpack.c.l.b16 %v2389
    %v2776 = vunpack.c.l.b16 %v2390
    %v2777 = vunpack.c.l.b16 %v2391
    %v2778 = vunpack.c.l.b16 %v2392
    %v2779 = vunpack.c.l.b16 %v2393
    %v2780 = vunpack.c.l.b16 %v2394
    %v2781 = vunpack.c.l.b16 %v2395
    %v2782 = vunpack.c.l.b16 %v2396
    %v2783 = vunpack.c.l.b16 %v2397
    %v2784 = vunpack.c.l.b16 %v2398
    %v2785 = vunpack.c.l.b16 %v2399
    %v2786 = vunpack.c.l.b16 %v2400
    %v2787 = vunpack.c.l.b16 %v2401
    %v2788 = vunpack.c.l.b16 %v2402
    %v2789 = vunpack.c.l.b16 %v2403
    %v2790 = vunpack.c.l.b16 %v2404
    %v2791 = vunpack.c.l.b16 %v2405
    %v2792 = vunpack.c.l.b16 %v2406
    %v2793 = vunpack.c.l.b16 %v2407
    %v2794 = vunpack.c.l.b16 %v2408
    %v2795 = vunpack.c.l.b16 %v2409
    %v2796 = vunpack.c.l.b16 %v2410
    %v2797 = vunpack.c.l.b16 %v2411
    %v2798 = vunpack.c.l.b16 %v2412
    %v2799 = vunpack.c.l.b16 %v2413
    %v2800 = vunpack.c.l.b16 %v2414
    %v2801 = vunpack.c.l.b16 %v2415
    %v2802 = vunpack.c.l.b16 %v2416
    %v2803 = vunpack.c.l.b16 %v2417
    %v2804 = vunpack.c.l.b16 %v2418
    %v2805 = vunpack.c.l.b16 %v2419
    %v2806 = vunpack.c.l.b16 %v2420
    %v2807 = vunpack.c.l.b16 %v2421
    %v2808 = vunpack.c.l.b16 %v2422
    %v2809 = vunpack.c.l.b16 %v2423
    %v2810 = vunpack.c.l.b16 %v2424
    %v2811 = vunpack.c.l.b16 %v2425
    %v2812 = vpack.c.b16 %v2765, %v2764
    %v2813 = vpack.c.b16 %v2767, %v2766
    %v2814 = vpack.c.b16 %v2769, %v2768
    %v2815 = vpack.c.b16 %v2771, %v2770
    %v2816 = vpack.c.b16 %v2773, %v2772
    %v2817 = vpack.c.b16 %v2775, %v2774
    %v2818 = vpack.c.b16 %v2777, %v2776
    %v2819 = vpack.c.b16 %v2779, %v2778
    %v2820 = vpack.c.b16 %v2781, %v2780
    %v2821 = vpack.c.b16 %v2783, %v2782
    %v2822 = vpack.c.b16 %v2785, %v2784
    %v2823 = vpack.c.b16 %v2787, %v2786
    %v2824 = vpack.c.b16 %v2789, %v2788
    %v2825 = vpack.c.b16 %v2791, %v2790
    %v2826 = vpack.c.b16 %v2793, %v2792
    %v2827 = vpack.c.b16 %v2795, %v2794
    %v2828 = vpack.c.b16 %v2797, %v2796
    %v2829 = vpack.c.b16 %v2799, %v2798
    %v2830 = vpack.c.b16 %v2801, %v2800
    %v2831 = vpack.c.b16 %v2803, %v2802
    %v2832 = vpack.c.b16 %v2805, %v2804
    %v2833 = vpack.c.b16 %v2807, %v2806
    %v2834 = vpack.c.b16 %v2809, %v2808
    %v2835 = vpack.c.b16 %v2811, %v2810
    %2860 = vmatprep.subr.bf16.mxu0 0
    %2861 = vmatpush1.bf16.msra.mxu0 %v2819
    %2862 = vmatprep.subr.bf16.mxu0 0
    %2863 = vmatpush1.bf16.msra.mxu0 %v2818
    %2864 = vmatprep.subr.bf16.mxu0 0
    %2865 = vmatpush1.bf16.msra.mxu0 %v2817
    %2866 = vmatprep.subr.bf16.mxu0 0
    %2867 = vmatpush1.bf16.msra.mxu0 %v2816
    %2868 = vmatprep.subr.bf16.mxu0 0
    %2869 = vmatpush1.bf16.msra.mxu0 %v2815
    %2870 = vmatprep.subr.bf16.mxu0 0
    %2871 = vmatpush1.bf16.msra.mxu0 %v2814
    %2872 = vmatprep.subr.bf16.mxu0 0
    %2873 = vmatpush1.bf16.msra.mxu0 %v2813
    %2874 = vmatprep.subr.bf16.mxu0 0
    %2875 = vmatpush1.bf16.msra.mxu0 %v2812
    %2876 = vmatprep.subr.bf16.mxu0 0
    %2877 = vmatpush2.bf16.msra.mxu0 %v2827
    %2878 = vmatprep.subr.bf16.mxu0 0
    %2879 = vmatpush2.bf16.msra.mxu0 %v2826
    %2880 = vmatprep.subr.bf16.mxu0 0
    %2881 = vmatpush2.bf16.msra.mxu0 %v2825
    %2882 = vmatprep.subr.bf16.mxu0 0
    %2883 = vmatpush2.bf16.msra.mxu0 %v2824
    %2884 = vmatprep.subr.bf16.mxu0 0
    %2885 = vmatpush2.bf16.msra.mxu0 %v2823
    %2886 = vmatprep.subr.bf16.mxu0 0
    %2887 = vmatpush2.bf16.msra.mxu0 %v2822
    %2888 = vmatprep.subr.bf16.mxu0 0
    %2889 = vmatpush2.bf16.msra.mxu0 %v2821
    %2890 = vmatprep.subr.bf16.mxu0 0
    %2891 = vmatpush2.bf16.msra.mxu0 %v2820
    %2892 = vmatprep.mubr.bf16.mxu0 %v2669
    %2893 = vmatmul.mubr.bf16.gmra.mxu0 %v2668
    %v2894 = vpop.f32.mrf.mxu0
    %v2895 = vadd.f32 %v2526, %v2894
    %v2896 = vpop.f32.mrf.mxu0
    %v2897 = vpop.f32.mrf.mxu0
    %v2898 = vadd.f32 %v2529, %v2897
    %v2899 = vpop.f32.mrf.mxu0
    %2900 = vmatprep.mubr.bf16.mxu0 %v2672
    %2901 = vmatmul.mubr.bf16.gmra.mxu0 %v2671
    %v2902 = vpop.f32.mrf.mxu0
    %v2903 = vadd.f32 %v2534, %v2902
    %v2904 = vpop.f32.mrf.mxu0
    %v2905 = vpop.f32.mrf.mxu0
    %v2906 = vadd.f32 %v2537, %v2905
    %v2907 = vpop.f32.mrf.mxu0
    %2908 = vmatprep.mubr.bf16.mxu0 %v2675
    %2909 = vmatmul.mubr.bf16.gmra.mxu0 %v2674
    %v2910 = vpop.f32.mrf.mxu0
    %v2911 = vadd.f32 %v2542, %v2910
    %v2912 = vpop.f32.mrf.mxu0
    %v2913 = vpop.f32.mrf.mxu0
    %v2914 = vadd.f32 %v2545, %v2913
    %v2915 = vpop.f32.mrf.mxu0
    %2916 = vmatprep.mubr.bf16.mxu0 %v2678
    %2917 = vmatmul.mubr.bf16.gmra.mxu0 %v2677
    %v2918 = vpop.f32.mrf.mxu0
    %v2919 = vadd.f32 %v2550, %v2918
    %v2920 = vpop.f32.mrf.mxu0
    %v2921 = vpop.f32.mrf.mxu0
    %v2922 = vadd.f32 %v2553, %v2921
    %v2923 = vpop.f32.mrf.mxu0
    %2924 = vmatprep.mubr.bf16.mxu0 %v2681
    %2925 = vmatmul.mubr.bf16.gmra.mxu0 %v2680
    %v2926 = vpop.f32.mrf.mxu0
    %v2927 = vadd.f32 %v2558, %v2926
    %v2928 = vpop.f32.mrf.mxu0
    %v2929 = vpop.f32.mrf.mxu0
    %v2930 = vadd.f32 %v2561, %v2929
    %v2931 = vpop.f32.mrf.mxu0
    %2932 = vmatprep.mubr.bf16.mxu0 %v2684
    %2933 = vmatmul.mubr.bf16.gmra.mxu0 %v2683
    %v2934 = vpop.f32.mrf.mxu0
    %v2935 = vadd.f32 %v2566, %v2934
    %v2936 = vpop.f32.mrf.mxu0
    %v2937 = vpop.f32.mrf.mxu0
    %v2938 = vadd.f32 %v2569, %v2937
    %v2939 = vpop.f32.mrf.mxu0
    %2940 = vmatprep.mubr.bf16.mxu0 %v2687
    %2941 = vmatmul.mubr.bf16.gmra.mxu0 %v2686
    %v2942 = vpop.f32.mrf.mxu0
    %v2943 = vadd.f32 %v2574, %v2942
    %v2944 = vpop.f32.mrf.mxu0
    %v2945 = vpop.f32.mrf.mxu0
    %v2946 = vadd.f32 %v2577, %v2945
    %v2947 = vpop.f32.mrf.mxu0
    %2948 = vmatprep.mubr.bf16.mxu0 %v2690
    %2949 = vmatmul.mubr.bf16.gmra.mxu0 %v2689
    %v2950 = vpop.f32.mrf.mxu0
    %v2951 = vadd.f32 %v2582, %v2950
    %v2952 = vpop.f32.mrf.mxu0
    %v2953 = vpop.f32.mrf.mxu0
    %v2954 = vadd.f32 %v2585, %v2953
    %v2955 = vpop.f32.mrf.mxu0
    %2956 = vdwg.mxu0
    %2957 = vmatprep.subr.bf16.mxu0 0
    %2958 = vmatpush1.bf16.msra.mxu0 %v2835
    %2959 = vmatprep.subr.bf16.mxu0 0
    %2960 = vmatpush1.bf16.msra.mxu0 %v2834
    %2961 = vmatprep.subr.bf16.mxu0 0
    %2962 = vmatpush1.bf16.msra.mxu0 %v2833
    %2963 = vmatprep.subr.bf16.mxu0 0
    %2964 = vmatpush1.bf16.msra.mxu0 %v2832
    %2965 = vmatprep.subr.bf16.mxu0 0
    %2966 = vmatpush1.bf16.msra.mxu0 %v2831
    %2967 = vmatprep.subr.bf16.mxu0 0
    %2968 = vmatpush1.bf16.msra.mxu0 %v2830
    %2969 = vmatprep.subr.bf16.mxu0 0
    %2970 = vmatpush1.bf16.msra.mxu0 %v2829
    %2971 = vmatprep.subr.bf16.mxu0 0
    %2972 = vmatpush1.bf16.msra.mxu0 %v2828
    %2973 = vmatprep.subr.bf16.mxu0 0
    %2974 = vmatpush2.bf16.msra.mxu0 0
    %2975 = vmatprep.subr.bf16.mxu0 0
    %2976 = vmatpush2.bf16.msra.mxu0 0
    %2977 = vmatprep.subr.bf16.mxu0 0
    %2978 = vmatpush2.bf16.msra.mxu0 0
    %2979 = vmatprep.subr.bf16.mxu0 0
    %2980 = vmatpush2.bf16.msra.mxu0 0
    %2981 = vmatprep.subr.bf16.mxu0 0
    %2982 = vmatpush2.bf16.msra.mxu0 0
    %2983 = vmatprep.subr.bf16.mxu0 0
    %2984 = vmatpush2.bf16.msra.mxu0 0
    %2985 = vmatprep.subr.bf16.mxu0 0
    %2986 = vmatpush2.bf16.msra.mxu0 0
    %2987 = vmatprep.subr.bf16.mxu0 0
    %2988 = vmatpush2.bf16.msra.mxu0 0
    %2989 = vmatprep.mubr.bf16.mxu0 0
    %2990 = vmatmul.mubr.bf16.gmra.mxu0 %v2670
    %v2991 = vpop.f32.mrf.mxu0
    %v2992 = vadd.f32 %v2895, %v2991
    %v2993 = vpop.f32.mrf.mxu0
    %v2994 = vpop.f32.mrf.mxu0
    %v2995 = vadd.f32 %v2898, %v2994
    %v2996 = vpop.f32.mrf.mxu0
    %2997 = vmatprep.mubr.bf16.mxu0 0
    %2998 = vmatmul.mubr.bf16.gmra.mxu0 %v2673
    %v2999 = vpop.f32.mrf.mxu0
    %v3000 = vadd.f32 %v2903, %v2999
    %v3001 = vpop.f32.mrf.mxu0
    %v3002 = vpop.f32.mrf.mxu0
    %v3003 = vadd.f32 %v2906, %v3002
    %v3004 = vpop.f32.mrf.mxu0
    %3005 = vmatprep.mubr.bf16.mxu0 0
    %3006 = vmatmul.mubr.bf16.gmra.mxu0 %v2676
    %v3007 = vpop.f32.mrf.mxu0
    %v3008 = vadd.f32 %v2911, %v3007
    %v3009 = vpop.f32.mrf.mxu0
    %v3010 = vpop.f32.mrf.mxu0
    %v3011 = vadd.f32 %v2914, %v3010
    %v3012 = vpop.f32.mrf.mxu0
    %3013 = vmatprep.mubr.bf16.mxu0 0
    %3014 = vmatmul.mubr.bf16.gmra.mxu0 %v2679
    %v3015 = vpop.f32.mrf.mxu0
    %v3016 = vadd.f32 %v2919, %v3015
    %v3017 = vpop.f32.mrf.mxu0
    %v3018 = vpop.f32.mrf.mxu0
    %v3019 = vadd.f32 %v2922, %v3018
    %v3020 = vpop.f32.mrf.mxu0
    %3021 = vmatprep.mubr.bf16.mxu0 0
    %3022 = vmatmul.mubr.bf16.gmra.mxu0 %v2682
    %v3023 = vpop.f32.mrf.mxu0
    %v3024 = vadd.f32 %v2927, %v3023
    %v3025 = vpop.f32.mrf.mxu0
    %v3026 = vpop.f32.mrf.mxu0
    %v3027 = vadd.f32 %v2930, %v3026
    %v3028 = vpop.f32.mrf.mxu0
    %3029 = vmatprep.mubr.bf16.mxu0 0
    %3030 = vmatmul.mubr.bf16.gmra.mxu0 %v2685
    %v3031 = vpop.f32.mrf.mxu0
    %v3032 = vadd.f32 %v2935, %v3031
    %v3033 = vpop.f32.mrf.mxu0
    %v3034 = vpop.f32.mrf.mxu0
    %v3035 = vadd.f32 %v2938, %v3034
    %v3036 = vpop.f32.mrf.mxu0
    %3037 = vmatprep.mubr.bf16.mxu0 0
    %3038 = vmatmul.mubr.bf16.gmra.mxu0 %v2688
    %v3039 = vpop.f32.mrf.mxu0
    %v3040 = vadd.f32 %v2943, %v3039
    %v3041 = vpop.f32.mrf.mxu0
    %v3042 = vpop.f32.mrf.mxu0
    %v3043 = vadd.f32 %v2946, %v3042
    %v3044 = vpop.f32.mrf.mxu0
    %3045 = vmatprep.mubr.bf16.mxu0 0
    %3046 = vmatmul.mubr.bf16.gmra.mxu0 %v2691
    %v3047 = vpop.f32.mrf.mxu0
    %v3048 = vadd.f32 %v2951, %v3047
    %v3049 = vpop.f32.mrf.mxu0
    %v3050 = vpop.f32.mrf.mxu0
    %v3051 = vadd.f32 %v2954, %v3050
    %v3052 = vpop.f32.mrf.mxu0
    %3053 = vdwg.mxu0
    %s3054 = scalar_lea.vmem %s4, 1
    %v3055 = vld [vmem:[%s3054] sm:$0x1]
    %v3057 = vlaneseq
    %v3058 = vshrl.u32 %v3057, 7
    %v3059 = vsub.s32 0, %v3058
    %v3060 = vrot.slane %v3055, %v3059
    %v3062 = vadd.f32 %v2992, %v3060
    %v3063 = vadd.f32 %v2995, %v3060
    %v3064 = vadd.f32 %v3000, %v3060
    %v3065 = vadd.f32 %v3003, %v3060
    %v3066 = vadd.f32 %v3008, %v3060
    %v3067 = vadd.f32 %v3011, %v3060
    %v3068 = vadd.f32 %v3016, %v3060
    %v3069 = vadd.f32 %v3019, %v3060
    %v3070 = vadd.f32 %v3024, %v3060
    %v3071 = vadd.f32 %v3027, %v3060
    %v3072 = vadd.f32 %v3032, %v3060
    %v3073 = vadd.f32 %v3035, %v3060
    %v3074 = vadd.f32 %v3040, %v3060
    %v3075 = vadd.f32 %v3043, %v3060
    %v3076 = vadd.f32 %v3048, %v3060
    %v3077 = vadd.f32 %v3051, %v3060
    %3078 = vst [vmem:[#allocation11] sm:$0xff] %v3062
    %3079 = vst [vmem:[#allocation11 + $0x8] sm:$0xff] %v3063
    %3080 = vst [vmem:[#allocation11 + $0x10] sm:$0xff] %v3064
    %3081 = vst [vmem:[#allocation11 + $0x18] sm:$0xff] %v3065
    %3082 = vst [vmem:[#allocation11 + $0x20] sm:$0xff] %v3066
    %3083 = vst [vmem:[#allocation11 + $0x28] sm:$0xff] %v3067
    %3084 = vst [vmem:[#allocation11 + $0x30] sm:$0xff] %v3068
    %3085 = vst [vmem:[#allocation11 + $0x38] sm:$0xff] %v3069
    %3086 = vst [vmem:[#allocation11 + $0x40] sm:$0xff] %v3070
    %3087 = vst [vmem:[#allocation11 + $0x48] sm:$0xff] %v3071
    %3088 = vst [vmem:[#allocation11 + $0x50] sm:$0xff] %v3072
    %3089 = vst [vmem:[#allocation11 + $0x58] sm:$0xff] %v3073
    %3090 = vst [vmem:[#allocation11 + $0x60] sm:$0xff] %v3074
    %3091 = vst [vmem:[#allocation11 + $0x68] sm:$0xff] %v3075
    %3092 = vst [vmem:[#allocation11 + $0x70] sm:$0xff] %v3076
    %3093 = vst [vmem:[#allocation11 + $0x78] sm:$0xff] %v3077
    // Predicated region
    $region38: #{tpu_custom_call.1} parent=1 // pred_check
      _
    $region39: #{tpu_custom_call.1} parent=1 // pred_check_branch
      %3095 = sbr.rel (0) target = $region41
    $region40: #{tpu_custom_call.1} parent=1 // pred_region
      %s3097 = ssub.s32 2048, 2048
      %3098 = vsyncadd [#allocation5], %s3097
      %s3099 = sshll.u32 [#allocation11], 4
      %s3100 = int_to_ptr.vmem [resolvable:$true] %s3099
      %3105 = dma.vmem_to_hbm [thread:$0]  %s3100, 2048, %s5, [#allocation5], 128, 128, 8
    $region41: #{tpu_custom_call.1} parent=1 // pred_fallthru
      _
    // Predicated region
    $region42: #{tpu_custom_call.1} parent=1 // pred_check
      _
    $region43: #{tpu_custom_call.1} parent=1 // pred_check_branch
      %3107 = sbr.rel (0) target = $region45
    $region44: #{tpu_custom_call.1} parent=1 // pred_region
      %3108 = dma.done [#allocation5], 2048
    $region45: #{tpu_custom_call.1} parent=1 // pred_fallthru
      _
    %3109 = vsyncpa [#allocation4], 1
    %3110 = vsyncpa [#allocation7], 1
    %3111 = vsyncpa [#allocation10], 1
    %3112 = vsyncpa [#allocation5], 1

</llo_original>
